<compile_context>
chip_gen: v7x
topology: tpu7x:2x2x1
jax: 0.10.0
libtpu: 0.0.40
codegen_flags: <defaults>
</compile_context>

<pallas_src>
import jax
import jax.numpy as jnp
from jax.experimental import pallas as pl
from jax.experimental.pallas import tpu as pltpu


def _silu(x):
    return x * jax.nn.sigmoid(x)


def _round_up(x, m):
    return (x + m - 1) // m * m


def _cdiv(a, b):
    return (a + b - 1) // b


def _vmem_budget_bytes():
    """Per-chip VMEM budget with headroom (128 MiB on v5e/v6e, 64 MiB on v7x)."""
    cap = 0
    try:
        cap = int(pltpu.get_tpu_info().vmem_capacity_bytes)
    except Exception:
        cap = 0
    if cap <= 0:
        cap = 64 * 2**20          # conservative default: v7x per-TensorCore VMEM
    return int(min(112 * 2**20, max(16 * 2**20, cap - 16 * 2**20)))


def _vmem_estimate(tm, d_model, compute_itemsize):
    """Lane-padding-aware working-set estimate for one row tile (generous)."""
    lane_d = _round_up(max(d_model + 1, 128), 128)   # (.., D[+1]) tiles pad to >=128 lanes
    est = 2 * tm * lane_d * 4                        # x tile (f32), double-buffered
    est += 6 * tm * lane_d * 4                       # h1/h2 + elementwise temporaries (f32)
    est += 2 * tm * lane_d * compute_itemsize        # in-kernel bf16 copies of x / h1
    est += 2 * 2 * tm * 4                            # pred/zp output blocks, double-buffered
    est += 2 * 2 * _round_up(d_model, 8) * lane_d * compute_itemsize   # w1(+w4 col), w2
    est += 6 * lane_d * 4                            # biases / head weights
    return est


def _make_kernel(d_model, use_bf16, fuse_zp):
    compute_dtype = jnp.bfloat16 if use_bf16 else jnp.float32

    def kernel(x_ref, w1_ref, b1_ref, w2_ref, b2_ref, heads_ref, hb_ref,
               pred_ref, zp_ref):
        tm = pred_ref.shape[-1]

        xf = x_ref[...]                                   # (tm, D) f32 straight from HBM
        xc = xf.astype(compute_dtype) if use_bf16 else xf  # MXU cast done in-kernel (free
                                                            # under DMA; no extra HBM pass)

        # First GEMM on the MXU, f32 accumulation.  In the f32 path the zero-prob head
        # (w4) rides along as an extra output column of w1 (free: output lanes padded).
        h1_full = jnp.dot(xc, w1_ref[...], preferred_element_type=jnp.float32)
        h1_full = h1_full + b1_ref[...]

        if fuse_zp:
            zp_pre = jnp.sum(h1_full[:, d_model:], axis=-1)      # x @ w4 + b4
            h1 = _silu(h1_full[:, :d_model])
        else:
            # bf16 path: keep the zero-prob head exactly f32 on the raw x tile.
            h1 = _silu(h1_full)
            w4 = heads_ref[1:2, :]                               # (1, D) f32
            zp_pre = jnp.sum(xf * w4, axis=-1) + hb_ref[1]

        h1c = h1.astype(compute_dtype) if use_bf16 else h1
        h2 = jnp.dot(h1c, w2_ref[...], preferred_element_type=jnp.float32) + b2_ref[...]
        h2 = _silu(h2)

        # Expr head: broadcast multiply (VPU) + lane reduce (XLU); no N=1 MXU pass.
        w3 = heads_ref[0:1, :]                                   # (1, D) f32
        pred = jnp.sum(h2 * w3, axis=-1) + hb_ref[0]

        # Lane-dense stores: one (1, tm) row per grid step (tm is a multiple of 128).
        pred_ref[...] = pred.reshape(1, tm).astype(pred_ref.dtype)
        zp_ref[...] = jax.nn.sigmoid(zp_pre).reshape(1, tm).astype(zp_ref.dtype)

    return kernel


def tiny_expr_decoder(x, params, *, use_bf16=False, target_tile_bytes=1 << 20):
    """x: [B, S, D] float32.  Returns dict(pred=[B, S], zero_probs=[B, S])."""
    B, S, D = x.shape
    M = B * S
    fuse_zp = not use_bf16                      # keep zp head exact-f32 in the bf16 path
    compute_dtype = jnp.bfloat16 if use_bf16 else jnp.float32
    compute_itemsize = jnp.dtype(compute_dtype).itemsize

    # x stays f32 in HBM; no row padding (ragged last block handled by Pallas — rows are
    # independent, so OOB garbage rows only produce garbage outputs that get sliced off).
    x2 = x.reshape(M, D).astype(jnp.float32)

    # ---- weight packing (weights are (in, out): y = x @ W + b) ----
    w1 = params["w1"]
    w2 = params["w2"]
    b1 = params["b1"].reshape(1, D)
    b2 = params["b2"].reshape(1, D)
    w3 = params["w3"].reshape(1, D)
    w4 = params["w4"].reshape(1, D)
    b3 = params["b3"].reshape(())
    b4 = params["b4"].reshape(())
    if fuse_zp:
        w1k = jnp.concatenate([w1, w4.T], axis=1).astype(compute_dtype)            # (D, D+1)
        b1k = jnp.concatenate([b1, b4.reshape(1, 1)], axis=1).astype(jnp.float32)  # (1, D+1)
    else:
        w1k = w1.astype(compute_dtype)
        b1k = b1.astype(jnp.float32)
    w2k = w2.astype(compute_dtype)
    b2k = b2.astype(jnp.float32)
    heads = jnp.concatenate([w3, w4], axis=0).astype(jnp.float32)                  # (2, D)
    hb = jnp.stack([b3, b4]).astype(jnp.float32)                                   # (2,) -> SMEM

    # ---- row-tile selection: ~1 MiB of x per grid step, multiple of 128 ----
    tm = _round_up(max(512, target_tile_bytes // (D * 4)), 128)
    tm = max(128, min(tm, _round_up(M, 128)))
    # Prefer >= 2 grid steps so a 2-TensorCore part (v7x) can shard the row axis.
    if M >= 256 and _cdiv(M, tm) < 2:
        tm = max(128, _round_up(_cdiv(M, 2), 128))
    # Shrink if the lane-padded working set would not fit this chip's VMEM budget.
    budget = _vmem_budget_bytes()
    while tm > 256 and _vmem_estimate(tm, D, compute_itemsize) > budget:
        tm = max(128, _round_up(tm // 2, 128))

    num_tiles = _cdiv(M, tm)
    M_out = num_tiles * tm           # output slab (tiny), so full blocks always in-bounds

    kernel = _make_kernel(D, use_bf16, fuse_zp)

    def _const_spec(shape, single_buffer):
        index_map = lambda i: (0,) * len(shape)
        if single_buffer:
            # Constant-index operands: fetched once; single buffer saves VMEM on v7x.
            return pl.BlockSpec(shape, index_map, pipeline_mode=pl.Buffered(1))
        return pl.BlockSpec(shape, index_map)

    def _run(single_buffer_weights):
        grid_spec = pltpu.PrefetchScalarGridSpec(
            num_scalar_prefetch=0,
            grid=(num_tiles,),
            in_specs=[
                pl.BlockSpec((tm, D), lambda i: (i, 0)),              # x rows (ragged edge OK)
                _const_spec(w1k.shape, single_buffer_weights),        # w1 (+ w4 column)
                _const_spec(b1k.shape, single_buffer_weights),        # b1 (+ b4)
                _const_spec(w2k.shape, single_buffer_weights),        # w2
                _const_spec(b2k.shape, single_buffer_weights),        # b2
                _const_spec(heads.shape, single_buffer_weights),      # [w3; w4]
                pl.BlockSpec(memory_space=pltpu.MemorySpace.SMEM),    # [b3, b4] scalars
            ],
            out_specs=[
                pl.BlockSpec((1, tm), lambda i: (0, i)),              # pred   (lane-dense)
                pl.BlockSpec((1, tm), lambda i: (0, i)),              # zero_probs
            ],
        )
        return pl.pallas_call(
            kernel,
            out_shape=(jax.ShapeDtypeStruct((1, M_out), jnp.float32),
                       jax.ShapeDtypeStruct((1, M_out), jnp.float32)),
            grid_spec=grid_spec,
            compiler_params=pltpu.CompilerParams(
                dimension_semantics=("parallel",),
                vmem_limit_bytes=int(budget)),
        )(x2, w1k, b1k, w2k, b2k, heads, hb)

    try:
        pred, zp = _run(True)        # single-buffered constant operands
    except Exception:
        pred, zp = _run(False)       # fallback if pl.Buffered(1) is unsupported here

    pred = pred.reshape(M_out)[:M].reshape(B, S)
    zp = zp.reshape(M_out)[:M].reshape(B, S)
    return {"pred": pred, "zero_probs": zp}


def init_params(key, d_model):
    """Deterministic synthetic parameters mirroring nn.Linear shapes.

    Stored as (in_features, out_features) so the kernel computes y = x @ W + b.
    """
    ks = jax.random.split(key, 8)
    scale = 1.0 / jnp.sqrt(d_model)
    return {
        "w1": jax.random.uniform(ks[0], (d_model, d_model), jnp.float32, -scale, scale),
        "b1": jax.random.uniform(ks[1], (1, d_model), jnp.float32, -scale, scale),
        "w2": jax.random.uniform(ks[2], (d_model, d_model), jnp.float32, -scale, scale),
        "b2": jax.random.uniform(ks[3], (1, d_model), jnp.float32, -scale, scale),
        "w3": jax.random.uniform(ks[4], (d_model, 1), jnp.float32, -scale, scale),
        "b3": jax.random.uniform(ks[5], (1, 1), jnp.float32, -scale, scale),
        "w4": jax.random.uniform(ks[6], (d_model, 1), jnp.float32, -scale, scale),
        "b4": jax.random.uniform(ks[7], (1, 1), jnp.float32, -scale, scale),
    }


def reference(x, params):
    """Pure-JAX reference of TinyExprDecoder.forward (explicit_zero_prob=True)."""
    hp = jax.lax.Precision.HIGHEST
    h = jax.nn.silu(jnp.dot(x, params["w1"], precision=hp) + params["b1"].reshape(-1))
    h = jax.nn.silu(jnp.dot(h, params["w2"], precision=hp) + params["b2"].reshape(-1))
    pred = jnp.sum(h * params["w3"].reshape(-1), axis=-1) + params["b3"].reshape(())
    zp = jax.nn.sigmoid(
        jnp.sum(x * params["w4"].reshape(-1), axis=-1) + params["b4"].reshape(()))
    return {"pred": pred, "zero_probs": zp}


if __name__ == "__main__":
    key = jax.random.PRNGKey(0)
    kx, kp, kx2 = jax.random.split(key, 3)

    B, S, D = 2, 8, 32   # batch_size, seq_len, d_model
    x = jax.random.normal(kx, (B, S, D), dtype=jnp.float32)
    params = init_params(kp, D)

    # Default f32 path (zero-prob head fused into the first GEMM).
    out = tiny_expr_decoder(x, params)
    out = jax.tree_util.tree_map(jax.block_until_ready, out)
    ref = reference(x, params)
    assert out["pred"].shape == (B, S)
    assert out["zero_probs"].shape == (B, S)
    assert jnp.allclose(out["pred"], ref["pred"], atol=2e-3, rtol=2e-3)
    assert jnp.allclose(out["zero_probs"], ref["zero_probs"], atol=2e-3, rtol=2e-3)

    # Multi-tile + ragged-edge path (no wrapper-side padding of x).
    B2, S2 = 3, 333
    x_big = jax.random.normal(kx2, (B2, S2, D), dtype=jnp.float32)
    out2 = tiny_expr_decoder(x_big, params)
    out2 = jax.tree_util.tree_map(jax.block_until_ready, out2)
    ref2 = reference(x_big, params)
    assert out2["pred"].shape == (B2, S2)
    assert jnp.allclose(out2["pred"], ref2["pred"], atol=2e-3, rtol=2e-3)
    assert jnp.allclose(out2["zero_probs"], ref2["zero_probs"], atol=2e-3, rtol=2e-3)

    # bf16 MXU path: x stays f32 in HBM, cast happens in-kernel; zp head stays f32.
    out_bf16 = tiny_expr_decoder(x, params, use_bf16=True)
    out_bf16 = jax.tree_util.tree_map(jax.block_until_ready, out_bf16)
    assert float(jnp.max(jnp.abs(out_bf16["pred"] - ref["pred"]))) < 1e-1
    assert float(jnp.max(jnp.abs(out_bf16["zero_probs"] - ref["zero_probs"]))) < 1e-2

    print("KERNEL_OK")
</pallas_src>

<mosaic_0001>
module attributes {stable_mosaic.version = 11 : i64} {
  func.func @kernel(%arg0: i32, %arg1: memref<128x32xf32, #tpu.memory_space<vmem>>, %arg2: memref<32x33xf32, #tpu.memory_space<vmem>>, %arg3: memref<1x33xf32, #tpu.memory_space<vmem>>, %arg4: memref<32x32xf32, #tpu.memory_space<vmem>>, %arg5: memref<1x32xf32, #tpu.memory_space<vmem>>, %arg6: memref<2x32xf32, #tpu.memory_space<vmem>>, %arg7: memref<2xf32, #tpu.memory_space<smem>>, %arg8: memref<1x128xf32, #tpu.memory_space<vmem>>, %arg9: memref<1x128xf32, #tpu.memory_space<vmem>>) attributes {dimension_semantics = [#tpu.dimension_semantics<parallel>], iteration_bounds = array<i64: 1>, scalar_prefetch = 0 : i64, scratch_operands = 0 : i64, tpu.core_type = #tpu.core_type<tc>, window_params = [{transform_indices = @transform_0, window_bounds = array<i64: 128, 32>}, {pipeline_mode = #tpu.pipeline_mode<synchronous>, transform_indices = @transform_1, window_bounds = array<i64: 32, 33>}, {pipeline_mode = #tpu.pipeline_mode<synchronous>, transform_indices = @transform_2, window_bounds = array<i64: 1, 33>}, {pipeline_mode = #tpu.pipeline_mode<synchronous>, transform_indices = @transform_3, window_bounds = array<i64: 32, 32>}, {pipeline_mode = #tpu.pipeline_mode<synchronous>, transform_indices = @transform_4, window_bounds = array<i64: 1, 32>}, {pipeline_mode = #tpu.pipeline_mode<synchronous>, transform_indices = @transform_5, window_bounds = array<i64: 2, 32>}, {transform_indices = @transform_6, window_bounds = array<i64: 2>}, {transform_indices = @transform_7, window_bounds = array<i64: 1, 128>}, {transform_indices = @transform_8, window_bounds = array<i64: 1, 128>}]} {
    %c0 = arith.constant 0 : index
    %c0_0 = arith.constant 0 : index
    %0 = vector.load %arg1[%c0, %c0_0] : memref<128x32xf32, #tpu.memory_space<vmem>>, vector<128x32xf32>
    %c0_1 = arith.constant 0 : index
    %c0_2 = arith.constant 0 : index
    %1 = vector.load %arg2[%c0_1, %c0_2] : memref<32x33xf32, #tpu.memory_space<vmem>>, vector<32x33xf32>
    %cst = arith.constant dense<0.000000e+00> : vector<128x33xf32>
    %2 = tpu.matmul %0, %1, %cst {dimension_numbers = #tpu.dot_dimension_numbers<[1], [0], [0], [1], [0, 0, 1, 1], [], []>} : vector<128x32xf32>, vector<32x33xf32>, vector<128x33xf32> -> vector<128x33xf32>
    %c0_3 = arith.constant 0 : index
    %c0_4 = arith.constant 0 : index
    %3 = vector.load %arg3[%c0_3, %c0_4] : memref<1x33xf32, #tpu.memory_space<vmem>>, vector<1x33xf32>
    %4 = vector.broadcast %3 : vector<1x33xf32> to vector<128x33xf32>
    %5 = arith.addf %2, %4 : vector<128x33xf32>
    %6 = vector.extract_strided_slice %5 {offsets = [0, 32], sizes = [128, 1], strides = [1, 1]} : vector<128x33xf32> to vector<128x1xf32>
    %cst_5 = arith.constant dense<0.000000e+00> : vector<128xf32>
    %7 = vector.multi_reduction <add>, %6, %cst_5 [1] : vector<128x1xf32> to vector<128xf32>
    %8 = vector.extract_strided_slice %5 {offsets = [0, 0], sizes = [128, 32], strides = [1, 1]} : vector<128x33xf32> to vector<128x32xf32>
    %9 = arith.negf %8 : vector<128x32xf32>
    %10 = math.exp %9 : vector<128x32xf32>
    %cst_6 = arith.constant 1.000000e+00 : f32
    %11 = vector.broadcast %cst_6 : f32 to vector<128x32xf32>
    %12 = arith.addf %11, %10 : vector<128x32xf32>
    %13 = arith.divf %11, %12 : vector<128x32xf32>
    %14 = arith.mulf %8, %13 : vector<128x32xf32>
    %c0_7 = arith.constant 0 : index
    %c0_8 = arith.constant 0 : index
    %15 = vector.load %arg4[%c0_7, %c0_8] : memref<32x32xf32, #tpu.memory_space<vmem>>, vector<32x32xf32>
    %cst_9 = arith.constant dense<0.000000e+00> : vector<128x32xf32>
    %16 = tpu.matmul %14, %15, %cst_9 {dimension_numbers = #tpu.dot_dimension_numbers<[1], [0], [0], [1], [0, 0, 1, 1], [], []>} : vector<128x32xf32>, vector<32x32xf32>, vector<128x32xf32> -> vector<128x32xf32>
    %c0_10 = arith.constant 0 : index
    %c0_11 = arith.constant 0 : index
    %17 = vector.load %arg5[%c0_10, %c0_11] : memref<1x32xf32, #tpu.memory_space<vmem>>, vector<1x32xf32>
    %18 = vector.broadcast %17 : vector<1x32xf32> to vector<128x32xf32>
    %19 = arith.addf %16, %18 : vector<128x32xf32>
    %20 = arith.negf %19 : vector<128x32xf32>
    %21 = math.exp %20 : vector<128x32xf32>
    %cst_12 = arith.constant 1.000000e+00 : f32
    %22 = vector.broadcast %cst_12 : f32 to vector<128x32xf32>
    %23 = arith.addf %22, %21 : vector<128x32xf32>
    %24 = arith.divf %22, %23 : vector<128x32xf32>
    %25 = arith.mulf %19, %24 : vector<128x32xf32>
    %c0_13 = arith.constant 0 : index
    %c0_14 = arith.constant 0 : index
    %26 = vector.load %arg6[%c0_13, %c0_14] : memref<2x32xf32, #tpu.memory_space<vmem>>, vector<1x32xf32>
    %27 = vector.broadcast %26 : vector<1x32xf32> to vector<128x32xf32>
    %28 = arith.mulf %25, %27 : vector<128x32xf32>
    %cst_15 = arith.constant dense<0.000000e+00> : vector<128xf32>
    %29 = vector.multi_reduction <add>, %28, %cst_15 [1] : vector<128x32xf32> to vector<128xf32>
    %c0_16 = arith.constant 0 : index
    %30 = memref.load %arg7[%c0_16] : memref<2xf32, #tpu.memory_space<smem>>
    %31 = vector.broadcast %30 : f32 to vector<128xf32>
    %32 = arith.addf %29, %31 : vector<128xf32>
    %33 = vector.shape_cast %32 : vector<128xf32> to vector<1x128xf32>
    %c0_17 = arith.constant 0 : index
    %c0_18 = arith.constant 0 : index
    %34 = vector.load %arg8[%c0_17, %c0_18] : memref<1x128xf32, #tpu.memory_space<vmem>>, vector<1x128xf32>
    tpu.vector_store %arg8[%c0_17, %c0_18], %33 {strides = array<i32>} : memref<1x128xf32, #tpu.memory_space<vmem>>, vector<1x128xf32>,
    %35 = arith.negf %7 : vector<128xf32>
    %36 = math.exp %35 : vector<128xf32>
    %cst_19 = arith.constant 1.000000e+00 : f32
    %37 = vector.broadcast %cst_19 : f32 to vector<128xf32>
    %38 = arith.addf %37, %36 : vector<128xf32>
    %39 = arith.divf %37, %38 : vector<128xf32>
    %40 = vector.shape_cast %39 : vector<128xf32> to vector<1x128xf32>
    %c0_20 = arith.constant 0 : index
    %c0_21 = arith.constant 0 : index
    %41 = vector.load %arg9[%c0_20, %c0_21] : memref<1x128xf32, #tpu.memory_space<vmem>>, vector<1x128xf32>
    tpu.vector_store %arg9[%c0_20, %c0_21], %40 {strides = array<i32>} : memref<1x128xf32, #tpu.memory_space<vmem>>, vector<1x128xf32>,
    return
  }
  func.func @transform_0(%arg0: i32) -> (i32, i32) {
    %c0_i32 = arith.constant 0 : i32
    %c0_i32_0 = arith.constant 0 : i32
    return %arg0, %c0_i32 : i32, i32
  }
  func.func @transform_1(%arg0: i32) -> (i32, i32) {
    %c0_i32 = arith.constant 0 : i32
    %c0_i32_0 = arith.constant 0 : i32
    %c0_i32_1 = arith.constant 0 : i32
    return %c0_i32, %c0_i32_0 : i32, i32
  }
  func.func @transform_2(%arg0: i32) -> (i32, i32) {
    %c0_i32 = arith.constant 0 : i32
    %c0_i32_0 = arith.constant 0 : i32
    %c0_i32_1 = arith.constant 0 : i32
    return %c0_i32, %c0_i32_0 : i32, i32
  }
  func.func @transform_3(%arg0: i32) -> (i32, i32) {
    %c0_i32 = arith.constant 0 : i32
    %c0_i32_0 = arith.constant 0 : i32
    %c0_i32_1 = arith.constant 0 : i32
    return %c0_i32, %c0_i32_0 : i32, i32
  }
  func.func @transform_4(%arg0: i32) -> (i32, i32) {
    %c0_i32 = arith.constant 0 : i32
    %c0_i32_0 = arith.constant 0 : i32
    %c0_i32_1 = arith.constant 0 : i32
    return %c0_i32, %c0_i32_0 : i32, i32
  }
  func.func @transform_5(%arg0: i32) -> (i32, i32) {
    %c0_i32 = arith.constant 0 : i32
    %c0_i32_0 = arith.constant 0 : i32
    %c0_i32_1 = arith.constant 0 : i32
    return %c0_i32, %c0_i32_0 : i32, i32
  }
  func.func @transform_6(%arg0: i32) -> i32 {
    %c0_i32 = arith.constant 0 : i32
    %c0_i32_0 = arith.constant 0 : i32
    return %c0_i32 : i32
  }
  func.func @transform_7(%arg0: i32) -> (i32, i32) {
    %c0_i32 = arith.constant 0 : i32
    %c0_i32_0 = arith.constant 0 : i32
    return %c0_i32, %arg0 : i32, i32
  }
  func.func @transform_8(%arg0: i32) -> (i32, i32) {
    %c0_i32 = arith.constant 0 : i32
    %c0_i32_0 = arith.constant 0 : i32
    return %c0_i32, %arg0 : i32, i32
  }
}

module attributes {stable_mosaic.version = 11 : i64} {
  func.func @kernel(%arg0: i32, %arg1: memref<128x32xf32, #tpu.memory_space<vmem>>, %arg2: memref<32x33xf32, #tpu.memory_space<vmem>>, %arg3: memref<1x33xf32, #tpu.memory_space<vmem>>, %arg4: memref<32x32xf32, #tpu.memory_space<vmem>>, %arg5: memref<1x32xf32, #tpu.memory_space<vmem>>, %arg6: memref<2x32xf32, #tpu.memory_space<vmem>>, %arg7: memref<2xf32, #tpu.memory_space<smem>>, %arg8: memref<1x128xf32, #tpu.memory_space<vmem>>, %arg9: memref<1x128xf32, #tpu.memory_space<vmem>>) attributes {dimension_semantics = [#tpu.dimension_semantics<parallel>], iteration_bounds = array<i64: 1>, scalar_prefetch = 0 : i64, scratch_operands = 0 : i64, tpu.core_type = #tpu.core_type<tc>, window_params = [{transform_indices = @transform_0, window_bounds = array<i64: 128, 32>}, {pipeline_mode = #tpu.pipeline_mode<synchronous>, transform_indices = @transform_1, window_bounds = array<i64: 32, 33>}, {pipeline_mode = #tpu.pipeline_mode<synchronous>, transform_indices = @transform_2, window_bounds = array<i64: 1, 33>}, {pipeline_mode = #tpu.pipeline_mode<synchronous>, transform_indices = @transform_3, window_bounds = array<i64: 32, 32>}, {pipeline_mode = #tpu.pipeline_mode<synchronous>, transform_indices = @transform_4, window_bounds = array<i64: 1, 32>}, {pipeline_mode = #tpu.pipeline_mode<synchronous>, transform_indices = @transform_5, window_bounds = array<i64: 2, 32>}, {transform_indices = @transform_6, window_bounds = array<i64: 2>}, {transform_indices = @transform_7, window_bounds = array<i64: 1, 128>}, {transform_indices = @transform_8, window_bounds = array<i64: 1, 128>}]} {
    %c0 = arith.constant 0 : index
    %c0_0 = arith.constant 0 : index
    %0 = vector.load %arg1[%c0, %c0_0] : memref<128x32xf32, #tpu.memory_space<vmem>>, vector<128x32xf32>
    %c0_1 = arith.constant 0 : index
    %c0_2 = arith.constant 0 : index
    %1 = vector.load %arg2[%c0_1, %c0_2] : memref<32x33xf32, #tpu.memory_space<vmem>>, vector<32x33xf32>
    %cst = arith.constant dense<0.000000e+00> : vector<128x33xf32>
    %2 = tpu.matmul %0, %1, %cst {dimension_numbers = #tpu.dot_dimension_numbers<[1], [0], [0], [1], [0, 0, 1, 1], [], []>} : vector<128x32xf32>, vector<32x33xf32>, vector<128x33xf32> -> vector<128x33xf32>
    %c0_3 = arith.constant 0 : index
    %c0_4 = arith.constant 0 : index
    %3 = vector.load %arg3[%c0_3, %c0_4] : memref<1x33xf32, #tpu.memory_space<vmem>>, vector<1x33xf32>
    %4 = vector.broadcast %3 : vector<1x33xf32> to vector<128x33xf32>
    %5 = arith.addf %2, %4 : vector<128x33xf32>
    %6 = vector.extract_strided_slice %5 {offsets = [0, 32], sizes = [128, 1], strides = [1, 1]} : vector<128x33xf32> to vector<128x1xf32>
    %cst_5 = arith.constant dense<0.000000e+00> : vector<128xf32>
    %7 = vector.multi_reduction <add>, %6, %cst_5 [1] : vector<128x1xf32> to vector<128xf32>
    %8 = vector.extract_strided_slice %5 {offsets = [0, 0], sizes = [128, 32], strides = [1, 1]} : vector<128x33xf32> to vector<128x32xf32>
    %9 = arith.negf %8 : vector<128x32xf32>
    %10 = math.exp %9 : vector<128x32xf32>
    %cst_6 = arith.constant 1.000000e+00 : f32
    %11 = vector.broadcast %cst_6 : f32 to vector<128x32xf32>
    %12 = arith.addf %11, %10 : vector<128x32xf32>
    %13 = arith.divf %11, %12 : vector<128x32xf32>
    %14 = arith.mulf %8, %13 : vector<128x32xf32>
    %c0_7 = arith.constant 0 : index
    %c0_8 = arith.constant 0 : index
    %15 = vector.load %arg4[%c0_7, %c0_8] : memref<32x32xf32, #tpu.memory_space<vmem>>, vector<32x32xf32>
    %cst_9 = arith.constant dense<0.000000e+00> : vector<128x32xf32>
    %16 = tpu.matmul %14, %15, %cst_9 {dimension_numbers = #tpu.dot_dimension_numbers<[1], [0], [0], [1], [0, 0, 1, 1], [], []>} : vector<128x32xf32>, vector<32x32xf32>, vector<128x32xf32> -> vector<128x32xf32>
    %c0_10 = arith.constant 0 : index
    %c0_11 = arith.constant 0 : index
    %17 = vector.load %arg5[%c0_10, %c0_11] : memref<1x32xf32, #tpu.memory_space<vmem>>, vector<1x32xf32>
    %18 = vector.broadcast %17 : vector<1x32xf32> to vector<128x32xf32>
    %19 = arith.addf %16, %18 : vector<128x32xf32>
    %20 = arith.negf %19 : vector<128x32xf32>
    %21 = math.exp %20 : vector<128x32xf32>
    %cst_12 = arith.constant 1.000000e+00 : f32
    %22 = vector.broadcast %cst_12 : f32 to vector<128x32xf32>
    %23 = arith.addf %22, %21 : vector<128x32xf32>
    %24 = arith.divf %22, %23 : vector<128x32xf32>
    %25 = arith.mulf %19, %24 : vector<128x32xf32>
    %c0_13 = arith.constant 0 : index
    %c0_14 = arith.constant 0 : index
    %26 = vector.load %arg6[%c0_13, %c0_14] : memref<2x32xf32, #tpu.memory_space<vmem>>, vector<1x32xf32>
    %27 = vector.broadcast %26 : vector<1x32xf32> to vector<128x32xf32>
    %28 = arith.mulf %25, %27 : vector<128x32xf32>
    %cst_15 = arith.constant dense<0.000000e+00> : vector<128xf32>
    %29 = vector.multi_reduction <add>, %28, %cst_15 [1] : vector<128x32xf32> to vector<128xf32>
    %c0_16 = arith.constant 0 : index
    %30 = memref.load %arg7[%c0_16] : memref<2xf32, #tpu.memory_space<smem>>
    %31 = vector.broadcast %30 : f32 to vector<128xf32>
    %32 = arith.addf %29, %31 : vector<128xf32>
    %33 = vector.shape_cast %32 : vector<128xf32> to vector<1x128xf32>
    %c0_17 = arith.constant 0 : index
    %c0_18 = arith.constant 0 : index
    %34 = vector.load %arg8[%c0_17, %c0_18] : memref<1x128xf32, #tpu.memory_space<vmem>>, vector<1x128xf32>
    tpu.vector_store %arg8[%c0_17, %c0_18], %33 {strides = array<i32>} : memref<1x128xf32, #tpu.memory_space<vmem>>, vector<1x128xf32>,
    %35 = arith.negf %7 : vector<128xf32>
    %36 = math.exp %35 : vector<128xf32>
    %cst_19 = arith.constant 1.000000e+00 : f32
    %37 = vector.broadcast %cst_19 : f32 to vector<128xf32>
    %38 = arith.addf %37, %36 : vector<128xf32>
    %39 = arith.divf %37, %38 : vector<128xf32>
    %40 = vector.shape_cast %39 : vector<128xf32> to vector<1x128xf32>
    %c0_20 = arith.constant 0 : index
    %c0_21 = arith.constant 0 : index
    %41 = vector.load %arg9[%c0_20, %c0_21] : memref<1x128xf32, #tpu.memory_space<vmem>>, vector<1x128xf32>
    tpu.vector_store %arg9[%c0_20, %c0_21], %40 {strides = array<i32>} : memref<1x128xf32, #tpu.memory_space<vmem>>, vector<1x128xf32>,
    return
  }
  func.func @transform_0(%arg0: i32) -> (i32, i32) {
    %c0_i32 = arith.constant 0 : i32
    %c0_i32_0 = arith.constant 0 : i32
    return %arg0, %c0_i32 : i32, i32
  }
  func.func @transform_1(%arg0: i32) -> (i32, i32) {
    %c0_i32 = arith.constant 0 : i32
    %c0_i32_0 = arith.constant 0 : i32
    %c0_i32_1 = arith.constant 0 : i32
    return %c0_i32, %c0_i32_0 : i32, i32
  }
  func.func @transform_2(%arg0: i32) -> (i32, i32) {
    %c0_i32 = arith.constant 0 : i32
    %c0_i32_0 = arith.constant 0 : i32
    %c0_i32_1 = arith.constant 0 : i32
    return %c0_i32, %c0_i32_0 : i32, i32
  }
  func.func @transform_3(%arg0: i32) -> (i32, i32) {
    %c0_i32 = arith.constant 0 : i32
    %c0_i32_0 = arith.constant 0 : i32
    %c0_i32_1 = arith.constant 0 : i32
    return %c0_i32, %c0_i32_0 : i32, i32
  }
  func.func @transform_4(%arg0: i32) -> (i32, i32) {
    %c0_i32 = arith.constant 0 : i32
    %c0_i32_0 = arith.constant 0 : i32
    %c0_i32_1 = arith.constant 0 : i32
    return %c0_i32, %c0_i32_0 : i32, i32
  }
  func.func @transform_5(%arg0: i32) -> (i32, i32) {
    %c0_i32 = arith.constant 0 : i32
    %c0_i32_0 = arith.constant 0 : i32
    %c0_i32_1 = arith.constant 0 : i32
    return %c0_i32, %c0_i32_0 : i32, i32
  }
  func.func @transform_6(%arg0: i32) -> i32 {
    %c0_i32 = arith.constant 0 : i32
    %c0_i32_0 = arith.constant 0 : i32
    return %c0_i32 : i32
  }
  func.func @transform_7(%arg0: i32) -> (i32, i32) {
    %c0_i32 = arith.constant 0 : i32
    %c0_i32_0 = arith.constant 0 : i32
    return %c0_i32, %arg0 : i32, i32
  }
  func.func @transform_8(%arg0: i32) -> (i32, i32) {
    %c0_i32 = arith.constant 0 : i32
    %c0_i32_0 = arith.constant 0 : i32
    return %c0_i32, %arg0 : i32, i32
  }
}

</mosaic_0001>

<llo_original>
// kernel: tpu_custom_call.1
$region0: #{tpu_custom_call.1}
  #allocation0 [shape = 'u32[]', space=smem, size = 0x4, offset = 0x4, fixed_abs, tag = 'smem constant byte address 0x4 - core index']
  #allocation1 [shape = 'u32[144,128]{1,0:T(1,128)}', space=vmem, size = 0x12000, scoped, tag = 'internal scratch']
  %s0 = inlined_call_operand.hbm [shape: f32[16,32], index: 0, kind: input, shape index: {}]
  %s1 = inlined_call_operand.hbm [shape: f32[32,33], index: 1, kind: input, shape index: {}]
  %s2 = inlined_call_operand.vmem [shape: f32[1,33], index: 2, kind: input, shape index: {}]
  %s3 = inlined_call_operand.hbm [shape: f32[32,32], index: 3, kind: input, shape index: {}]
  %s4 = inlined_call_operand.vmem [shape: f32[1,32], index: 4, kind: input, shape index: {}]
  %s5 = inlined_call_operand.vmem [shape: f32[2,32], index: 5, kind: input, shape index: {}]
  %s6 = inlined_call_operand.vmem [shape: f32[2], index: 6, kind: input, shape index: {}]
  %s7 = inlined_call_operand.hbm [shape: f32[1,128], index: 7, kind: output, shape index: {0}]
  %s8 = inlined_call_operand.hbm [shape: f32[1,128], index: 8, kind: output, shape index: {1}]
  %9 = xla_tuple %s7, %s8
  %s10 = sld [smem:[#allocation0]]
  $region62: #{tpu_custom_call.1} parent=0
    _
  %s12 = ssub.s32 1, %s10
  %s13 = scalar_select 0, %s12, %s10
  $region1: #{tpu_custom_call.1} parent=0
    #allocation2 [shape = 'u8[65536]{0}', space=vmem, size = 0x10000, scoped, tag = 'input window, operand 0, single buffered']
    #allocation3 [shape = 's32[1]{0}', space=sflag, size = 0x4, scoped, tag = 'scoped memory for tpu_custom_call.1']
    #allocation4 [shape = 's32[1]{0}', space=sflag, size = 0x4, scoped, tag = 'scoped memory for tpu_custom_call.1']
    #allocation5 [shape = 's32[1]{0}', space=sflag, size = 0x4, scoped, tag = 'scoped memory for tpu_custom_call.1']
    #allocation6 [shape = 'u8[16384]{0}', space=vmem, size = 0x4000, scoped, tag = 'input window, operand 1, single buffered']
    #allocation7 [shape = 's32[1]{0}', space=sflag, size = 0x4, scoped, tag = 'scoped memory for tpu_custom_call.1']
    #allocation8 [shape = 'u8[16384]{0}', space=vmem, size = 0x4000, scoped, tag = 'input window, operand 3, single buffered']
    #allocation9 [shape = 'u8[512]{0}', space=smem, size = 0x200, scoped, tag = 'input window, operand 6, single buffered']
    #allocation10 [shape = 'u8[512]{0}', space=vmem, size = 0x400, scoped, tag = 'output window, operand 0, single buffered']
    #allocation11 [shape = 'u8[512]{0}', space=vmem, size = 0x400, scoped, tag = 'output window, operand 1, single buffered']
    #allocation12 [shape = 's32[1]{0}', space=sflag, size = 0x4, scoped, tag = 'scoped memory for tpu_custom_call.1']
    %14 = vsyncpa [#allocation3], 0
    %15 = vsyncpa [#allocation7], 0
    %16 = vsyncpa [#allocation5], 0
    %17 = vsyncpa [#allocation4], 0
    %18 = vsyncpa [#allocation12], 0
    // Predicated region
    $region2: #{tpu_custom_call.1} parent=1 // pred_check
      _
    $region3: #{tpu_custom_call.1} parent=1 // pred_check_branch
      %20 = sbr.rel (0) target = $region5
    $region4: #{tpu_custom_call.1} parent=1 // pred_region
      %s22 = ssub.s32 2048, 256
      %23 = vsyncadd [#allocation3], %s22
      %s24 = sshll.u32 [#allocation2], 4
      %s25 = int_to_ptr.vmem [resolvable:$true] %s24
      %30 = dma.hbm_to_vmem [thread:$0]  %s0, 256, %s25, [#allocation3], 128, 128, 8
    $region5: #{tpu_custom_call.1} parent=1 // pred_fallthru
      _
    // Predicated region
    $region6: #{tpu_custom_call.1} parent=1 // pred_check
      _
    $region7: #{tpu_custom_call.1} parent=1 // pred_check_branch
      %32 = sbr.rel (0) target = $region9
    $region8: #{tpu_custom_call.1} parent=1 // pred_region
      %s34 = ssub.s32 512, 512
      %35 = vsyncadd [#allocation7], %s34
      %s36 = sshll.u32 [#allocation6], 4
      %s37 = int_to_ptr.vmem [resolvable:$true] %s36
      %42 = dma.hbm_to_vmem [thread:$0]  %s1, 512, %s37, [#allocation7], 128, 128, 8
    $region9: #{tpu_custom_call.1} parent=1 // pred_fallthru
      _
    // Predicated region
    $region10: #{tpu_custom_call.1} parent=1 // pred_check
      _
    $region11: #{tpu_custom_call.1} parent=1 // pred_check_branch
      %44 = sbr.rel (0) target = $region13
    $region12: #{tpu_custom_call.1} parent=1 // pred_region
      _
    $region13: #{tpu_custom_call.1} parent=1 // pred_fallthru
      _
    // Predicated region
    $region14: #{tpu_custom_call.1} parent=1 // pred_check
      _
    $region15: #{tpu_custom_call.1} parent=1 // pred_check_branch
      %46 = sbr.rel (0) target = $region17
    $region16: #{tpu_custom_call.1} parent=1 // pred_region
      %s48 = ssub.s32 512, 512
      %49 = vsyncadd [#allocation7], %s48
      %s50 = sshll.u32 [#allocation8], 4
      %s51 = int_to_ptr.vmem [resolvable:$true] %s50
      %56 = dma.hbm_to_vmem [thread:$0]  %s3, 512, %s51, [#allocation7], 128, 128, 8
    $region17: #{tpu_custom_call.1} parent=1 // pred_fallthru
      _
    // Predicated region
    $region18: #{tpu_custom_call.1} parent=1 // pred_check
      _
    $region19: #{tpu_custom_call.1} parent=1 // pred_check_branch
      %58 = sbr.rel (0) target = $region21
    $region20: #{tpu_custom_call.1} parent=1 // pred_region
      _
    $region21: #{tpu_custom_call.1} parent=1 // pred_fallthru
      _
    // Predicated region
    $region22: #{tpu_custom_call.1} parent=1 // pred_check
      _
    $region23: #{tpu_custom_call.1} parent=1 // pred_check_branch
      %60 = sbr.rel (0) target = $region25
    $region24: #{tpu_custom_call.1} parent=1 // pred_region
      _
    $region25: #{tpu_custom_call.1} parent=1 // pred_fallthru
      _
    // Predicated region
    $region26: #{tpu_custom_call.1} parent=1 // pred_check
      _
    $region27: #{tpu_custom_call.1} parent=1 // pred_check_branch
      %62 = sbr.rel (0) target = $region29
    $region28: #{tpu_custom_call.1} parent=1 // pred_region
      %s64 = ssub.s32 16, 16
      %65 = vsyncadd [#allocation5], %s64
      %s67 = sshll.u32 %s6, 4
      %s68 = int_to_ptr.vmem [resolvable:$true] %s67
      %70 = dma.vmem_to_smem %s68, 16, [#allocation9], [#allocation5]
    $region29: #{tpu_custom_call.1} parent=1 // pred_fallthru
      _
    // Predicated region
    $region30: #{tpu_custom_call.1} parent=1 // pred_check
      _
    $region31: #{tpu_custom_call.1} parent=1 // pred_check_branch
      %72 = sbr.rel (0) target = $region33
    $region32: #{tpu_custom_call.1} parent=1 // pred_region
      %73 = dma.done [#allocation3], 2048
    $region33: #{tpu_custom_call.1} parent=1 // pred_fallthru
      _
    // Predicated region
    $region34: #{tpu_custom_call.1} parent=1 // pred_check
      _
    $region35: #{tpu_custom_call.1} parent=1 // pred_check_branch
      %75 = sbr.rel (0) target = $region37
    $region36: #{tpu_custom_call.1} parent=1 // pred_region
      %76 = dma.done [#allocation7], 512
    $region37: #{tpu_custom_call.1} parent=1 // pred_fallthru
      _
    // Predicated region
    $region38: #{tpu_custom_call.1} parent=1 // pred_check
      _
    $region39: #{tpu_custom_call.1} parent=1 // pred_check_branch
      %78 = sbr.rel (0) target = $region41
    $region40: #{tpu_custom_call.1} parent=1 // pred_region
      %79 = dma.done [#allocation7], 512
    $region41: #{tpu_custom_call.1} parent=1 // pred_fallthru
      _
    // Predicated region
    $region42: #{tpu_custom_call.1} parent=1 // pred_check
      _
    $region43: #{tpu_custom_call.1} parent=1 // pred_check_branch
      %81 = sbr.rel (0) target = $region45
    $region44: #{tpu_custom_call.1} parent=1 // pred_region
      %82 = dma.done [#allocation5], 16
    $region45: #{tpu_custom_call.1} parent=1 // pred_fallthru
      _
    %83 = sfence
    %v84 = vld [vmem:[#allocation2] sm:$0xff]
    %v85 = vld [vmem:[#allocation2 + $0x8] sm:$0xff]
    %v86 = vld [vmem:[#allocation2 + $0x10] sm:$0xff]
    %v87 = vld [vmem:[#allocation2 + $0x18] sm:$0xff]
    %v88 = vld [vmem:[#allocation2 + $0x20] sm:$0xff]
    %v89 = vld [vmem:[#allocation2 + $0x28] sm:$0xff]
    %v90 = vld [vmem:[#allocation2 + $0x30] sm:$0xff]
    %v91 = vld [vmem:[#allocation2 + $0x38] sm:$0xff]
    %v92 = vld [vmem:[#allocation2 + $0x40] sm:$0xff]
    %v93 = vld [vmem:[#allocation2 + $0x48] sm:$0xff]
    %v94 = vld [vmem:[#allocation2 + $0x50] sm:$0xff]
    %v95 = vld [vmem:[#allocation2 + $0x58] sm:$0xff]
    %v96 = vld [vmem:[#allocation2 + $0x60] sm:$0xff]
    %v97 = vld [vmem:[#allocation2 + $0x68] sm:$0xff]
    %v98 = vld [vmem:[#allocation2 + $0x70] sm:$0xff]
    %v99 = vld [vmem:[#allocation2 + $0x78] sm:$0xff]
    %v100 = vld [vmem:[#allocation6] sm:$0xff]
    %v101 = vld [vmem:[#allocation6 + $0x8] sm:$0xff]
    %v102 = vld [vmem:[#allocation6 + $0x10] sm:$0xff]
    %v103 = vld [vmem:[#allocation6 + $0x18] sm:$0xff]
    %v104 = vld [vmem:[%s2] sm:$0x1]
    %v106 = vlaneseq
    %v107 = vshrl.u32 %v106, 7
    %v108 = vsub.s32 0, %v107
    %v109 = vrot.slane %v104, %v108
    %vm111 = vcmask 261120
    %v113 = vsel %vm111, %v84, 0
    %v116 = vsel %vm111, %v85, 0
    %v119 = vsel %vm111, %v86, 0
    %v122 = vsel %vm111, %v87, 0
    %v125 = vsel %vm111, %v88, 0
    %v128 = vsel %vm111, %v89, 0
    %v131 = vsel %vm111, %v90, 0
    %v134 = vsel %vm111, %v91, 0
    %v137 = vsel %vm111, %v92, 0
    %v140 = vsel %vm111, %v93, 0
    %v143 = vsel %vm111, %v94, 0
    %v146 = vsel %vm111, %v95, 0
    %v149 = vsel %vm111, %v96, 0
    %v152 = vsel %vm111, %v97, 0
    %v155 = vsel %vm111, %v98, 0
    %v158 = vsel %vm111, %v99, 0
    %160 = vmatprep.subr.mxu0 0.0
    %161 = vmatpush1.msra.mxu0 %v100
    %162 = vmatprep.subr.mxu0 0.0
    %163 = vmatpush1.msra.mxu0 %v101
    %164 = vmatprep.subr.mxu0 0.0
    %165 = vmatpush1.msra.mxu0 %v102
    %166 = vmatprep.subr.mxu0 0.0
    %167 = vmatpush1.msra.mxu0 %v103
    %168 = vmatprep.subr.mxu0 0.0
    %169 = vmatpush1.msra.mxu0 0.0
    %170 = vmatprep.subr.mxu0 0.0
    %171 = vmatpush1.msra.mxu0 0.0
    %172 = vmatprep.subr.mxu0 0.0
    %173 = vmatpush1.msra.mxu0 0.0
    %174 = vmatprep.subr.mxu0 0.0
    %175 = vmatpush1.msra.mxu0 0.0
    %176 = vmatprep.subr.mxu0 0.0
    %177 = vmatpush1.msra.mxu0 0.0
    %178 = vmatprep.subr.mxu0 0.0
    %179 = vmatpush1.msra.mxu0 0.0
    %180 = vmatprep.subr.mxu0 0.0
    %181 = vmatpush1.msra.mxu0 0.0
    %182 = vmatprep.subr.mxu0 0.0
    %183 = vmatpush1.msra.mxu0 0.0
    %184 = vmatprep.subr.mxu0 0.0
    %185 = vmatpush1.msra.mxu0 0.0
    %186 = vmatprep.subr.mxu0 0.0
    %187 = vmatpush1.msra.mxu0 0.0
    %188 = vmatprep.subr.mxu0 0.0
    %189 = vmatpush1.msra.mxu0 0.0
    %190 = vmatprep.subr.mxu0 0.0
    %191 = vmatpush1.msra.mxu0 0.0
    %192 = vmatprep.subr.mxu0 0.0
    %193 = vmatpush1.msra.mxu0 0.0
    %194 = vmatprep.subr.mxu0 0.0
    %195 = vmatpush1.msra.mxu0 0.0
    %196 = vmatprep.subr.mxu0 0.0
    %197 = vmatpush1.msra.mxu0 0.0
    %198 = vmatprep.subr.mxu0 0.0
    %199 = vmatpush1.msra.mxu0 0.0
    %200 = vmatprep.subr.mxu0 0.0
    %201 = vmatpush1.msra.mxu0 0.0
    %202 = vmatprep.subr.mxu0 0.0
    %203 = vmatpush1.msra.mxu0 0.0
    %204 = vmatprep.subr.mxu0 0.0
    %205 = vmatpush1.msra.mxu0 0.0
    %206 = vmatprep.subr.mxu0 0.0
    %207 = vmatpush1.msra.mxu0 0.0
    %208 = vmatprep.subr.mxu0 0.0
    %209 = vmatpush1.msra.mxu0 0.0
    %210 = vmatprep.subr.mxu0 0.0
    %211 = vmatpush1.msra.mxu0 0.0
    %212 = vmatprep.subr.mxu0 0.0
    %213 = vmatpush1.msra.mxu0 0.0
    %214 = vmatprep.subr.mxu0 0.0
    %215 = vmatpush1.msra.mxu0 0.0
    %216 = vmatprep.subr.mxu0 0.0
    %217 = vmatpush1.msra.mxu0 0.0
    %218 = vmatprep.subr.mxu0 0.0
    %219 = vmatpush1.msra.mxu0 0.0
    %220 = vmatprep.subr.mxu0 0.0
    %221 = vmatpush1.msra.mxu0 0.0
    %222 = vmatprep.subr.mxu0 0.0
    %223 = vmatpush1.msra.mxu0 0.0
    %224 = vmatprep.mubr.f32.mxu0 0.0
    %225 = vmatmul.mubr.f32.gmra.mrb[0].mxu0 %v113
    %v226 = vpop.f32.mrb[0].mxu0
    %v227 = vadd.f32 %v109, %v226
    %v228 = vpop.f32.mrb[0].mxu0
    %229 = vmatprep.mubr.f32.mxu0 0.0
    %230 = vmatmul.mubr.f32.gmra.mrb[0].mxu0 %v116
    %v231 = vpop.f32.mrb[0].mxu0
    %v232 = vadd.f32 %v109, %v231
    %v233 = vpop.f32.mrb[0].mxu0
    %234 = vmatprep.mubr.f32.mxu0 0.0
    %235 = vmatmul.mubr.f32.gmra.mrb[0].mxu0 %v119
    %v236 = vpop.f32.mrb[0].mxu0
    %v237 = vadd.f32 %v109, %v236
    %v238 = vpop.f32.mrb[0].mxu0
    %239 = vmatprep.mubr.f32.mxu0 0.0
    %240 = vmatmul.mubr.f32.gmra.mrb[0].mxu0 %v122
    %v241 = vpop.f32.mrb[0].mxu0
    %v242 = vadd.f32 %v109, %v241
    %v243 = vpop.f32.mrb[0].mxu0
    %244 = vmatprep.mubr.f32.mxu0 0.0
    %245 = vmatmul.mubr.f32.gmra.mrb[0].mxu0 %v125
    %v246 = vpop.f32.mrb[0].mxu0
    %v247 = vadd.f32 %v109, %v246
    %v248 = vpop.f32.mrb[0].mxu0
    %249 = vmatprep.mubr.f32.mxu0 0.0
    %250 = vmatmul.mubr.f32.gmra.mrb[0].mxu0 %v128
    %v251 = vpop.f32.mrb[0].mxu0
    %v252 = vadd.f32 %v109, %v251
    %v253 = vpop.f32.mrb[0].mxu0
    %254 = vmatprep.mubr.f32.mxu0 0.0
    %255 = vmatmul.mubr.f32.gmra.mrb[0].mxu0 %v131
    %v256 = vpop.f32.mrb[0].mxu0
    %v257 = vadd.f32 %v109, %v256
    %v258 = vpop.f32.mrb[0].mxu0
    %259 = vmatprep.mubr.f32.mxu0 0.0
    %260 = vmatmul.mubr.f32.gmra.mrb[0].mxu0 %v134
    %v261 = vpop.f32.mrb[0].mxu0
    %v262 = vadd.f32 %v109, %v261
    %v263 = vpop.f32.mrb[0].mxu0
    %264 = vmatprep.mubr.f32.mxu0 0.0
    %265 = vmatmul.mubr.f32.gmra.mrb[0].mxu0 %v137
    %v266 = vpop.f32.mrb[0].mxu0
    %v267 = vadd.f32 %v109, %v266
    %v268 = vpop.f32.mrb[0].mxu0
    %269 = vmatprep.mubr.f32.mxu0 0.0
    %270 = vmatmul.mubr.f32.gmra.mrb[0].mxu0 %v140
    %v271 = vpop.f32.mrb[0].mxu0
    %v272 = vadd.f32 %v109, %v271
    %v273 = vpop.f32.mrb[0].mxu0
    %274 = vmatprep.mubr.f32.mxu0 0.0
    %275 = vmatmul.mubr.f32.gmra.mrb[0].mxu0 %v143
    %v276 = vpop.f32.mrb[0].mxu0
    %v277 = vadd.f32 %v109, %v276
    %v278 = vpop.f32.mrb[0].mxu0
    %279 = vmatprep.mubr.f32.mxu0 0.0
    %280 = vmatmul.mubr.f32.gmra.mrb[0].mxu0 %v146
    %v281 = vpop.f32.mrb[0].mxu0
    %v282 = vadd.f32 %v109, %v281
    %v283 = vpop.f32.mrb[0].mxu0
    %284 = vmatprep.mubr.f32.mxu0 0.0
    %285 = vmatmul.mubr.f32.gmra.mrb[0].mxu0 %v149
    %v286 = vpop.f32.mrb[0].mxu0
    %v287 = vadd.f32 %v109, %v286
    %v288 = vpop.f32.mrb[0].mxu0
    %289 = vmatprep.mubr.f32.mxu0 0.0
    %290 = vmatmul.mubr.f32.gmra.mrb[0].mxu0 %v152
    %v291 = vpop.f32.mrb[0].mxu0
    %v292 = vadd.f32 %v109, %v291
    %v293 = vpop.f32.mrb[0].mxu0
    %294 = vmatprep.mubr.f32.mxu0 0.0
    %295 = vmatmul.mubr.f32.gmra.mrb[0].mxu0 %v155
    %v296 = vpop.f32.mrb[0].mxu0
    %v297 = vadd.f32 %v109, %v296
    %v298 = vpop.f32.mrb[0].mxu0
    %299 = vmatprep.mubr.f32.mxu0 0.0
    %300 = vmatmul.mubr.f32.gmra.mrb[0].mxu0 %v158
    %v301 = vpop.f32.mrb[0].mxu0
    %v302 = vadd.f32 %v109, %v301
    %v303 = vpop.f32.mrb[0].mxu0
    %304 = vdwg.mxu0
    %v305 = vadd.f32 %v227, 0.0
    %v306 = vadd.f32 %v232, 0.0
    %v307 = vadd.f32 %v237, 0.0
    %v308 = vadd.f32 %v242, 0.0
    %v309 = vadd.f32 %v247, 0.0
    %v310 = vadd.f32 %v252, 0.0
    %v311 = vadd.f32 %v257, 0.0
    %v312 = vadd.f32 %v262, 0.0
    %v313 = vadd.f32 %v267, 0.0
    %v314 = vadd.f32 %v272, 0.0
    %v315 = vadd.f32 %v277, 0.0
    %v316 = vadd.f32 %v282, 0.0
    %v317 = vadd.f32 %v287, 0.0
    %v318 = vadd.f32 %v292, 0.0
    %v319 = vadd.f32 %v297, 0.0
    %v320 = vadd.f32 %v302, 0.0
    %v321 = vxor.u32 %v227, 2147483648
    %v322 = vxor.u32 %v232, 2147483648
    %v323 = vxor.u32 %v237, 2147483648
    %v324 = vxor.u32 %v242, 2147483648
    %v325 = vxor.u32 %v247, 2147483648
    %v326 = vxor.u32 %v252, 2147483648
    %v327 = vxor.u32 %v257, 2147483648
    %v328 = vxor.u32 %v262, 2147483648
    %v329 = vxor.u32 %v267, 2147483648
    %v330 = vxor.u32 %v272, 2147483648
    %v331 = vxor.u32 %v277, 2147483648
    %v332 = vxor.u32 %v282, 2147483648
    %v333 = vxor.u32 %v287, 2147483648
    %v334 = vxor.u32 %v292, 2147483648
    %v335 = vxor.u32 %v297, 2147483648
    %v336 = vxor.u32 %v302, 2147483648
    %v337 = vmul.f32 %v321, 1.442695
    %v338 = vpow.pop %v337
    %v339 = vmul.f32 %v322, 1.442695
    %v340 = vpow.pop %v339
    %v341 = vmul.f32 %v323, 1.442695
    %v342 = vpow.pop %v341
    %v343 = vmul.f32 %v324, 1.442695
    %v344 = vpow.pop %v343
    %v345 = vmul.f32 %v325, 1.442695
    %v346 = vpow.pop %v345
    %v347 = vmul.f32 %v326, 1.442695
    %v348 = vpow.pop %v347
    %v349 = vmul.f32 %v327, 1.442695
    %v350 = vpow.pop %v349
    %v351 = vmul.f32 %v328, 1.442695
    %v352 = vpow.pop %v351
    %v353 = vmul.f32 %v329, 1.442695
    %v354 = vpow.pop %v353
    %v355 = vmul.f32 %v330, 1.442695
    %v356 = vpow.pop %v355
    %v357 = vmul.f32 %v331, 1.442695
    %v358 = vpow.pop %v357
    %v359 = vmul.f32 %v332, 1.442695
    %v360 = vpow.pop %v359
    %v361 = vmul.f32 %v333, 1.442695
    %v362 = vpow.pop %v361
    %v363 = vmul.f32 %v334, 1.442695
    %v364 = vpow.pop %v363
    %v365 = vmul.f32 %v335, 1.442695
    %v366 = vpow.pop %v365
    %v367 = vmul.f32 %v336, 1.442695
    %v368 = vpow.pop %v367
    %v369 = vadd.f32 %v338, 1.0
    %v370 = vadd.f32 %v340, 1.0
    %v371 = vadd.f32 %v342, 1.0
    %v372 = vadd.f32 %v344, 1.0
    %v373 = vadd.f32 %v346, 1.0
    %v374 = vadd.f32 %v348, 1.0
    %v375 = vadd.f32 %v350, 1.0
    %v376 = vadd.f32 %v352, 1.0
    %v377 = vadd.f32 %v354, 1.0
    %v378 = vadd.f32 %v356, 1.0
    %v379 = vadd.f32 %v358, 1.0
    %v380 = vadd.f32 %v360, 1.0
    %v381 = vadd.f32 %v362, 1.0
    %v382 = vadd.f32 %v364, 1.0
    %v383 = vadd.f32 %v366, 1.0
    %v384 = vadd.f32 %v368, 1.0
    %v385 = vrcp.pop %v369
    %v386 = vmul.f32 1.0, %v385
    %v387 = vrcp.pop %v370
    %v388 = vmul.f32 1.0, %v387
    %v389 = vrcp.pop %v371
    %v390 = vmul.f32 1.0, %v389
    %v391 = vrcp.pop %v372
    %v392 = vmul.f32 1.0, %v391
    %v393 = vrcp.pop %v373
    %v394 = vmul.f32 1.0, %v393
    %v395 = vrcp.pop %v374
    %v396 = vmul.f32 1.0, %v395
    %v397 = vrcp.pop %v375
    %v398 = vmul.f32 1.0, %v397
    %v399 = vrcp.pop %v376
    %v400 = vmul.f32 1.0, %v399
    %v401 = vrcp.pop %v377
    %v402 = vmul.f32 1.0, %v401
    %v403 = vrcp.pop %v378
    %v404 = vmul.f32 1.0, %v403
    %v405 = vrcp.pop %v379
    %v406 = vmul.f32 1.0, %v405
    %v407 = vrcp.pop %v380
    %v408 = vmul.f32 1.0, %v407
    %v409 = vrcp.pop %v381
    %v410 = vmul.f32 1.0, %v409
    %v411 = vrcp.pop %v382
    %v412 = vmul.f32 1.0, %v411
    %v413 = vrcp.pop %v383
    %v414 = vmul.f32 1.0, %v413
    %v415 = vrcp.pop %v384
    %v416 = vmul.f32 1.0, %v415
    %v417 = vmul.f32 %v227, %v386
    %v418 = vmul.f32 %v232, %v388
    %v419 = vmul.f32 %v237, %v390
    %v420 = vmul.f32 %v242, %v392
    %v421 = vmul.f32 %v247, %v394
    %v422 = vmul.f32 %v252, %v396
    %v423 = vmul.f32 %v257, %v398
    %v424 = vmul.f32 %v262, %v400
    %v425 = vmul.f32 %v267, %v402
    %v426 = vmul.f32 %v272, %v404
    %v427 = vmul.f32 %v277, %v406
    %v428 = vmul.f32 %v282, %v408
    %v429 = vmul.f32 %v287, %v410
    %v430 = vmul.f32 %v292, %v412
    %v431 = vmul.f32 %v297, %v414
    %v432 = vmul.f32 %v302, %v416
    %v433 = vld [vmem:[#allocation8] sm:$0xff]
    %v434 = vld [vmem:[#allocation8 + $0x8] sm:$0xff]
    %v435 = vld [vmem:[#allocation8 + $0x10] sm:$0xff]
    %v436 = vld [vmem:[#allocation8 + $0x18] sm:$0xff]
    %v437 = vld [vmem:[%s4] sm:$0x1]
    %v439 = vlaneseq
    %v440 = vshrl.u32 %v439, 7
    %v441 = vsub.s32 0, %v440
    %v442 = vrot.slane %v437, %v441
    %v445 = vsel %vm111, %v417, 0
    %v448 = vsel %vm111, %v418, 0
    %v451 = vsel %vm111, %v419, 0
    %v454 = vsel %vm111, %v420, 0
    %v457 = vsel %vm111, %v421, 0
    %v460 = vsel %vm111, %v422, 0
    %v463 = vsel %vm111, %v423, 0
    %v466 = vsel %vm111, %v424, 0
    %v469 = vsel %vm111, %v425, 0
    %v472 = vsel %vm111, %v426, 0
    %v475 = vsel %vm111, %v427, 0
    %v478 = vsel %vm111, %v428, 0
    %v481 = vsel %vm111, %v429, 0
    %v484 = vsel %vm111, %v430, 0
    %v487 = vsel %vm111, %v431, 0
    %v490 = vsel %vm111, %v432, 0
    %492 = vmatprep.subr.mxu0 0.0
    %493 = vmatpush1.msra.mxu0 %v433
    %494 = vmatprep.subr.mxu0 0.0
    %495 = vmatpush1.msra.mxu0 %v434
    %496 = vmatprep.subr.mxu0 0.0
    %497 = vmatpush1.msra.mxu0 %v435
    %498 = vmatprep.subr.mxu0 0.0
    %499 = vmatpush1.msra.mxu0 %v436
    %500 = vmatprep.subr.mxu0 0.0
    %501 = vmatpush1.msra.mxu0 0.0
    %502 = vmatprep.subr.mxu0 0.0
    %503 = vmatpush1.msra.mxu0 0.0
    %504 = vmatprep.subr.mxu0 0.0
    %505 = vmatpush1.msra.mxu0 0.0
    %506 = vmatprep.subr.mxu0 0.0
    %507 = vmatpush1.msra.mxu0 0.0
    %508 = vmatprep.subr.mxu0 0.0
    %509 = vmatpush1.msra.mxu0 0.0
    %510 = vmatprep.subr.mxu0 0.0
    %511 = vmatpush1.msra.mxu0 0.0
    %512 = vmatprep.subr.mxu0 0.0
    %513 = vmatpush1.msra.mxu0 0.0
    %514 = vmatprep.subr.mxu0 0.0
    %515 = vmatpush1.msra.mxu0 0.0
    %516 = vmatprep.subr.mxu0 0.0
    %517 = vmatpush1.msra.mxu0 0.0
    %518 = vmatprep.subr.mxu0 0.0
    %519 = vmatpush1.msra.mxu0 0.0
    %520 = vmatprep.subr.mxu0 0.0
    %521 = vmatpush1.msra.mxu0 0.0
    %522 = vmatprep.subr.mxu0 0.0
    %523 = vmatpush1.msra.mxu0 0.0
    %524 = vmatprep.subr.mxu0 0.0
    %525 = vmatpush1.msra.mxu0 0.0
    %526 = vmatprep.subr.mxu0 0.0
    %527 = vmatpush1.msra.mxu0 0.0
    %528 = vmatprep.subr.mxu0 0.0
    %529 = vmatpush1.msra.mxu0 0.0
    %530 = vmatprep.subr.mxu0 0.0
    %531 = vmatpush1.msra.mxu0 0.0
    %532 = vmatprep.subr.mxu0 0.0
    %533 = vmatpush1.msra.mxu0 0.0
    %534 = vmatprep.subr.mxu0 0.0
    %535 = vmatpush1.msra.mxu0 0.0
    %536 = vmatprep.subr.mxu0 0.0
    %537 = vmatpush1.msra.mxu0 0.0
    %538 = vmatprep.subr.mxu0 0.0
    %539 = vmatpush1.msra.mxu0 0.0
    %540 = vmatprep.subr.mxu0 0.0
    %541 = vmatpush1.msra.mxu0 0.0
    %542 = vmatprep.subr.mxu0 0.0
    %543 = vmatpush1.msra.mxu0 0.0
    %544 = vmatprep.subr.mxu0 0.0
    %545 = vmatpush1.msra.mxu0 0.0
    %546 = vmatprep.subr.mxu0 0.0
    %547 = vmatpush1.msra.mxu0 0.0
    %548 = vmatprep.subr.mxu0 0.0
    %549 = vmatpush1.msra.mxu0 0.0
    %550 = vmatprep.subr.mxu0 0.0
    %551 = vmatpush1.msra.mxu0 0.0
    %552 = vmatprep.subr.mxu0 0.0
    %553 = vmatpush1.msra.mxu0 0.0
    %554 = vmatprep.subr.mxu0 0.0
    %555 = vmatpush1.msra.mxu0 0.0
    %556 = vmatprep.mubr.f32.mxu0 0.0
    %557 = vmatmul.mubr.f32.gmra.mrb[0].mxu0 %v445
    %v558 = vpop.f32.mrb[0].mxu0
    %v559 = vadd.f32 %v442, %v558
    %v560 = vpop.f32.mrb[0].mxu0
    %561 = vmatprep.mubr.f32.mxu0 0.0
    %562 = vmatmul.mubr.f32.gmra.mrb[0].mxu0 %v448
    %v563 = vpop.f32.mrb[0].mxu0
    %v564 = vadd.f32 %v442, %v563
    %v565 = vpop.f32.mrb[0].mxu0
    %566 = vmatprep.mubr.f32.mxu0 0.0
    %567 = vmatmul.mubr.f32.gmra.mrb[0].mxu0 %v451
    %v568 = vpop.f32.mrb[0].mxu0
    %v569 = vadd.f32 %v442, %v568
    %v570 = vpop.f32.mrb[0].mxu0
    %571 = vmatprep.mubr.f32.mxu0 0.0
    %572 = vmatmul.mubr.f32.gmra.mrb[0].mxu0 %v454
    %v573 = vpop.f32.mrb[0].mxu0
    %v574 = vadd.f32 %v442, %v573
    %v575 = vpop.f32.mrb[0].mxu0
    %576 = vmatprep.mubr.f32.mxu0 0.0
    %577 = vmatmul.mubr.f32.gmra.mrb[0].mxu0 %v457
    %v578 = vpop.f32.mrb[0].mxu0
    %v579 = vadd.f32 %v442, %v578
    %v580 = vpop.f32.mrb[0].mxu0
    %581 = vmatprep.mubr.f32.mxu0 0.0
    %582 = vmatmul.mubr.f32.gmra.mrb[0].mxu0 %v460
    %v583 = vpop.f32.mrb[0].mxu0
    %v584 = vadd.f32 %v442, %v583
    %v585 = vpop.f32.mrb[0].mxu0
    %586 = vmatprep.mubr.f32.mxu0 0.0
    %587 = vmatmul.mubr.f32.gmra.mrb[0].mxu0 %v463
    %v588 = vpop.f32.mrb[0].mxu0
    %v589 = vadd.f32 %v442, %v588
    %v590 = vpop.f32.mrb[0].mxu0
    %591 = vmatprep.mubr.f32.mxu0 0.0
    %592 = vmatmul.mubr.f32.gmra.mrb[0].mxu0 %v466
    %v593 = vpop.f32.mrb[0].mxu0
    %v594 = vadd.f32 %v442, %v593
    %v595 = vpop.f32.mrb[0].mxu0
    %596 = vmatprep.mubr.f32.mxu0 0.0
    %597 = vmatmul.mubr.f32.gmra.mrb[0].mxu0 %v469
    %v598 = vpop.f32.mrb[0].mxu0
    %v599 = vadd.f32 %v442, %v598
    %v600 = vpop.f32.mrb[0].mxu0
    %601 = vmatprep.mubr.f32.mxu0 0.0
    %602 = vmatmul.mubr.f32.gmra.mrb[0].mxu0 %v472
    %v603 = vpop.f32.mrb[0].mxu0
    %v604 = vadd.f32 %v442, %v603
    %v605 = vpop.f32.mrb[0].mxu0
    %606 = vmatprep.mubr.f32.mxu0 0.0
    %607 = vmatmul.mubr.f32.gmra.mrb[0].mxu0 %v475
    %v608 = vpop.f32.mrb[0].mxu0
    %v609 = vadd.f32 %v442, %v608
    %v610 = vpop.f32.mrb[0].mxu0
    %611 = vmatprep.mubr.f32.mxu0 0.0
    %612 = vmatmul.mubr.f32.gmra.mrb[0].mxu0 %v478
    %v613 = vpop.f32.mrb[0].mxu0
    %v614 = vadd.f32 %v442, %v613
    %v615 = vpop.f32.mrb[0].mxu0
    %616 = vmatprep.mubr.f32.mxu0 0.0
    %617 = vmatmul.mubr.f32.gmra.mrb[0].mxu0 %v481
    %v618 = vpop.f32.mrb[0].mxu0
    %v619 = vadd.f32 %v442, %v618
    %v620 = vpop.f32.mrb[0].mxu0
    %621 = vmatprep.mubr.f32.mxu0 0.0
    %622 = vmatmul.mubr.f32.gmra.mrb[0].mxu0 %v484
    %v623 = vpop.f32.mrb[0].mxu0
    %v624 = vadd.f32 %v442, %v623
    %v625 = vpop.f32.mrb[0].mxu0
    %626 = vmatprep.mubr.f32.mxu0 0.0
    %627 = vmatmul.mubr.f32.gmra.mrb[0].mxu0 %v487
    %v628 = vpop.f32.mrb[0].mxu0
    %v629 = vadd.f32 %v442, %v628
    %v630 = vpop.f32.mrb[0].mxu0
    %631 = vmatprep.mubr.f32.mxu0 0.0
    %632 = vmatmul.mubr.f32.gmra.mrb[0].mxu0 %v490
    %v633 = vpop.f32.mrb[0].mxu0
    %v634 = vadd.f32 %v442, %v633
    %v635 = vpop.f32.mrb[0].mxu0
    %636 = vdwg.mxu0
    %v637 = vxor.u32 %v559, 2147483648
    %v638 = vxor.u32 %v564, 2147483648
    %v639 = vxor.u32 %v569, 2147483648
    %v640 = vxor.u32 %v574, 2147483648
    %v641 = vxor.u32 %v579, 2147483648
    %v642 = vxor.u32 %v584, 2147483648
    %v643 = vxor.u32 %v589, 2147483648
    %v644 = vxor.u32 %v594, 2147483648
    %v645 = vxor.u32 %v599, 2147483648
    %v646 = vxor.u32 %v604, 2147483648
    %v647 = vxor.u32 %v609, 2147483648
    %v648 = vxor.u32 %v614, 2147483648
    %v649 = vxor.u32 %v619, 2147483648
    %v650 = vxor.u32 %v624, 2147483648
    %v651 = vxor.u32 %v629, 2147483648
    %v652 = vxor.u32 %v634, 2147483648
    %v653 = vmul.f32 %v637, 1.442695
    %v654 = vpow.pop %v653
    %v655 = vmul.f32 %v638, 1.442695
    %v656 = vpow.pop %v655
    %v657 = vmul.f32 %v639, 1.442695
    %v658 = vpow.pop %v657
    %v659 = vmul.f32 %v640, 1.442695
    %v660 = vpow.pop %v659
    %v661 = vmul.f32 %v641, 1.442695
    %v662 = vpow.pop %v661
    %v663 = vmul.f32 %v642, 1.442695
    %v664 = vpow.pop %v663
    %v665 = vmul.f32 %v643, 1.442695
    %v666 = vpow.pop %v665
    %v667 = vmul.f32 %v644, 1.442695
    %v668 = vpow.pop %v667
    %v669 = vmul.f32 %v645, 1.442695
    %v670 = vpow.pop %v669
    %v671 = vmul.f32 %v646, 1.442695
    %v672 = vpow.pop %v671
    %v673 = vmul.f32 %v647, 1.442695
    %v674 = vpow.pop %v673
    %v675 = vmul.f32 %v648, 1.442695
    %v676 = vpow.pop %v675
    %v677 = vmul.f32 %v649, 1.442695
    %v678 = vpow.pop %v677
    %v679 = vmul.f32 %v650, 1.442695
    %v680 = vpow.pop %v679
    %v681 = vmul.f32 %v651, 1.442695
    %v682 = vpow.pop %v681
    %v683 = vmul.f32 %v652, 1.442695
    %v684 = vpow.pop %v683
    %v685 = vadd.f32 %v654, 1.0
    %v686 = vadd.f32 %v656, 1.0
    %v687 = vadd.f32 %v658, 1.0
    %v688 = vadd.f32 %v660, 1.0
    %v689 = vadd.f32 %v662, 1.0
    %v690 = vadd.f32 %v664, 1.0
    %v691 = vadd.f32 %v666, 1.0
    %v692 = vadd.f32 %v668, 1.0
    %v693 = vadd.f32 %v670, 1.0
    %v694 = vadd.f32 %v672, 1.0
    %v695 = vadd.f32 %v674, 1.0
    %v696 = vadd.f32 %v676, 1.0
    %v697 = vadd.f32 %v678, 1.0
    %v698 = vadd.f32 %v680, 1.0
    %v699 = vadd.f32 %v682, 1.0
    %v700 = vadd.f32 %v684, 1.0
    %v701 = vrcp.pop %v685
    %v702 = vmul.f32 1.0, %v701
    %v703 = vrcp.pop %v686
    %v704 = vmul.f32 1.0, %v703
    %v705 = vrcp.pop %v687
    %v706 = vmul.f32 1.0, %v705
    %v707 = vrcp.pop %v688
    %v708 = vmul.f32 1.0, %v707
    %v709 = vrcp.pop %v689
    %v710 = vmul.f32 1.0, %v709
    %v711 = vrcp.pop %v690
    %v712 = vmul.f32 1.0, %v711
    %v713 = vrcp.pop %v691
    %v714 = vmul.f32 1.0, %v713
    %v715 = vrcp.pop %v692
    %v716 = vmul.f32 1.0, %v715
    %v717 = vrcp.pop %v693
    %v718 = vmul.f32 1.0, %v717
    %v719 = vrcp.pop %v694
    %v720 = vmul.f32 1.0, %v719
    %v721 = vrcp.pop %v695
    %v722 = vmul.f32 1.0, %v721
    %v723 = vrcp.pop %v696
    %v724 = vmul.f32 1.0, %v723
    %v725 = vrcp.pop %v697
    %v726 = vmul.f32 1.0, %v725
    %v727 = vrcp.pop %v698
    %v728 = vmul.f32 1.0, %v727
    %v729 = vrcp.pop %v699
    %v730 = vmul.f32 1.0, %v729
    %v731 = vrcp.pop %v700
    %v732 = vmul.f32 1.0, %v731
    %v733 = vmul.f32 %v559, %v702
    %v734 = vmul.f32 %v564, %v704
    %v735 = vmul.f32 %v569, %v706
    %v736 = vmul.f32 %v574, %v708
    %v737 = vmul.f32 %v579, %v710
    %v738 = vmul.f32 %v584, %v712
    %v739 = vmul.f32 %v589, %v714
    %v740 = vmul.f32 %v594, %v716
    %v741 = vmul.f32 %v599, %v718
    %v742 = vmul.f32 %v604, %v720
    %v743 = vmul.f32 %v609, %v722
    %v744 = vmul.f32 %v614, %v724
    %v745 = vmul.f32 %v619, %v726
    %v746 = vmul.f32 %v624, %v728
    %v747 = vmul.f32 %v629, %v730
    %v748 = vmul.f32 %v634, %v732
    %v749 = vld [vmem:[%s5] sm:$0x1]
    %v750 = vlaneseq
    %v751 = vshrl.u32 %v750, 7
    %v752 = vsub.s32 0, %v751
    %v753 = vrot.slane %v749, %v752
    %v754 = vmul.f32 %v733, %v753
    %v755 = vmul.f32 %v734, %v753
    %v756 = vmul.f32 %v735, %v753
    %v757 = vmul.f32 %v736, %v753
    %v758 = vmul.f32 %v737, %v753
    %v759 = vmul.f32 %v738, %v753
    %v760 = vmul.f32 %v739, %v753
    %v761 = vmul.f32 %v740, %v753
    %v762 = vmul.f32 %v741, %v753
    %v763 = vmul.f32 %v742, %v753
    %v764 = vmul.f32 %v743, %v753
    %v765 = vmul.f32 %v744, %v753
    %v766 = vmul.f32 %v745, %v753
    %v767 = vmul.f32 %v746, %v753
    %v768 = vmul.f32 %v747, %v753
    %v769 = vmul.f32 %v748, %v753
    %v770 = vsel %vm111, %v754, 0.0
    %771 = vadd.xlane.f32.xlu0 %v770
    %v772 = vpop.xlane.xlu0 %771
    %v773 = vsel %vm111, %v755, 0.0
    %774 = vadd.xlane.f32.xlu0 %v773
    %v775 = vpop.xlane.xlu0 %774
    %v776 = vsel %vm111, %v756, 0.0
    %777 = vadd.xlane.f32.xlu0 %v776
    %v778 = vpop.xlane.xlu0 %777
    %v779 = vsel %vm111, %v757, 0.0
    %780 = vadd.xlane.f32.xlu0 %v779
    %v781 = vpop.xlane.xlu0 %780
    %v782 = vsel %vm111, %v758, 0.0
    %783 = vadd.xlane.f32.xlu0 %v782
    %v784 = vpop.xlane.xlu0 %783
    %v785 = vsel %vm111, %v759, 0.0
    %786 = vadd.xlane.f32.xlu0 %v785
    %v787 = vpop.xlane.xlu0 %786
    %v788 = vsel %vm111, %v760, 0.0
    %789 = vadd.xlane.f32.xlu0 %v788
    %v790 = vpop.xlane.xlu0 %789
    %v791 = vsel %vm111, %v761, 0.0
    %792 = vadd.xlane.f32.xlu0 %v791
    %v793 = vpop.xlane.xlu0 %792
    %v794 = vsel %vm111, %v762, 0.0
    %795 = vadd.xlane.f32.xlu0 %v794
    %v796 = vpop.xlane.xlu0 %795
    %v797 = vsel %vm111, %v763, 0.0
    %798 = vadd.xlane.f32.xlu0 %v797
    %v799 = vpop.xlane.xlu0 %798
    %v800 = vsel %vm111, %v764, 0.0
    %801 = vadd.xlane.f32.xlu0 %v800
    %v802 = vpop.xlane.xlu0 %801
    %v803 = vsel %vm111, %v765, 0.0
    %804 = vadd.xlane.f32.xlu0 %v803
    %v805 = vpop.xlane.xlu0 %804
    %v806 = vsel %vm111, %v766, 0.0
    %807 = vadd.xlane.f32.xlu0 %v806
    %v808 = vpop.xlane.xlu0 %807
    %v809 = vsel %vm111, %v767, 0.0
    %810 = vadd.xlane.f32.xlu0 %v809
    %v811 = vpop.xlane.xlu0 %810
    %v812 = vsel %vm111, %v768, 0.0
    %813 = vadd.xlane.f32.xlu0 %v812
    %v814 = vpop.xlane.xlu0 %813
    %v815 = vsel %vm111, %v769, 0.0
    %816 = vadd.xlane.f32.xlu0 %v815
    %v817 = vpop.xlane.xlu0 %816
    %s818 = sld [smem:[#allocation9]]
    %v819 = vstv %s818
    %v820 = vadd.f32 %v772, %v819
    %v821 = vadd.f32 %v775, %v819
    %v822 = vadd.f32 %v778, %v819
    %v823 = vadd.f32 %v781, %v819
    %v824 = vadd.f32 %v784, %v819
    %v825 = vadd.f32 %v787, %v819
    %v826 = vadd.f32 %v790, %v819
    %v827 = vadd.f32 %v793, %v819
    %v828 = vadd.f32 %v796, %v819
    %v829 = vadd.f32 %v799, %v819
    %v830 = vadd.f32 %v802, %v819
    %v831 = vadd.f32 %v805, %v819
    %v832 = vadd.f32 %v808, %v819
    %v833 = vadd.f32 %v811, %v819
    %v834 = vadd.f32 %v814, %v819
    %v835 = vadd.f32 %v817, %v819
    %v852 = vlaneseq
    %v853 = vand.u32 %v852, 127
    %v854 = vlaneseq
    %v855 = vshrl.u32 %v854, 7
    %v856 = vsub.s32 %v853, %v855
    %v857 = vrot.slane %v820, %v856
    %v858 = vadd.s32 %v853, 4294967288
    %v859 = vlaneseq
    %v860 = vshrl.u32 %v859, 7
    %v861 = vsub.s32 %v858, %v860
    %v862 = vrot.slane %v821, %v861
    %vm863 = vcmask 130112
    %v864 = vsel %vm863, %v862, %v857
    %v865 = vadd.s32 %v853, 4294967280
    %v866 = vlaneseq
    %v867 = vshrl.u32 %v866, 7
    %v868 = vsub.s32 %v865, %v867
    %v869 = vrot.slane %v822, %v868
    %vm870 = vcmask 195712
    %v871 = vsel %vm870, %v869, %v864
    %v872 = vadd.s32 %v853, 4294967272
    %v873 = vlaneseq
    %v874 = vshrl.u32 %v873, 7
    %v875 = vsub.s32 %v872, %v874
    %v876 = vrot.slane %v823, %v875
    %vm877 = vcmask 261312
    %v878 = vsel %vm877, %v876, %v871
    %v879 = vadd.s32 %v853, 4294967264
    %v880 = vlaneseq
    %v881 = vshrl.u32 %v880, 7
    %v882 = vsub.s32 %v879, %v881
    %v883 = vrot.slane %v824, %v882
    %vm884 = vcmask 326912
    %v885 = vsel %vm884, %v883, %v878
    %v886 = vadd.s32 %v853, 4294967256
    %v887 = vlaneseq
    %v888 = vshrl.u32 %v887, 7
    %v889 = vsub.s32 %v886, %v888
    %v890 = vrot.slane %v825, %v889
    %vm891 = vcmask 392512
    %v892 = vsel %vm891, %v890, %v885
    %v893 = vadd.s32 %v853, 4294967248
    %v894 = vlaneseq
    %v895 = vshrl.u32 %v894, 7
    %v896 = vsub.s32 %v893, %v895
    %v897 = vrot.slane %v826, %v896
    %vm898 = vcmask 458112
    %v899 = vsel %vm898, %v897, %v892
    %v900 = vadd.s32 %v853, 4294967240
    %v901 = vlaneseq
    %v902 = vshrl.u32 %v901, 7
    %v903 = vsub.s32 %v900, %v902
    %v904 = vrot.slane %v827, %v903
    %vm905 = vcmask 523712
    %v906 = vsel %vm905, %v904, %v899
    %v907 = vadd.s32 %v853, 4294967232
    %v908 = vlaneseq
    %v909 = vshrl.u32 %v908, 7
    %v910 = vsub.s32 %v907, %v909
    %v911 = vrot.slane %v828, %v910
    %vm912 = vcmask 589312
    %v913 = vsel %vm912, %v911, %v906
    %v914 = vadd.s32 %v853, 4294967224
    %v915 = vlaneseq
    %v916 = vshrl.u32 %v915, 7
    %v917 = vsub.s32 %v914, %v916
    %v918 = vrot.slane %v829, %v917
    %vm919 = vcmask 654912
    %v920 = vsel %vm919, %v918, %v913
    %v921 = vadd.s32 %v853, 4294967216
    %v922 = vlaneseq
    %v923 = vshrl.u32 %v922, 7
    %v924 = vsub.s32 %v921, %v923
    %v925 = vrot.slane %v830, %v924
    %vm926 = vcmask 720512
    %v927 = vsel %vm926, %v925, %v920
    %v928 = vadd.s32 %v853, 4294967208
    %v929 = vlaneseq
    %v930 = vshrl.u32 %v929, 7
    %v931 = vsub.s32 %v928, %v930
    %v932 = vrot.slane %v831, %v931
    %vm933 = vcmask 786112
    %v934 = vsel %vm933, %v932, %v927
    %v935 = vadd.s32 %v853, 4294967200
    %v936 = vlaneseq
    %v937 = vshrl.u32 %v936, 7
    %v938 = vsub.s32 %v935, %v937
    %v939 = vrot.slane %v832, %v938
    %vm940 = vcmask 851712
    %v941 = vsel %vm940, %v939, %v934
    %v942 = vadd.s32 %v853, 4294967192
    %v943 = vlaneseq
    %v944 = vshrl.u32 %v943, 7
    %v945 = vsub.s32 %v942, %v944
    %v946 = vrot.slane %v833, %v945
    %vm947 = vcmask 917312
    %v948 = vsel %vm947, %v946, %v941
    %v949 = vadd.s32 %v853, 4294967184
    %v950 = vlaneseq
    %v951 = vshrl.u32 %v950, 7
    %v952 = vsub.s32 %v949, %v951
    %v953 = vrot.slane %v834, %v952
    %vm954 = vcmask 982912
    %v955 = vsel %vm954, %v953, %v948
    %v956 = vadd.s32 %v853, 4294967176
    %v957 = vlaneseq
    %v958 = vshrl.u32 %v957, 7
    %v959 = vsub.s32 %v956, %v958
    %v960 = vrot.slane %v835, %v959
    %vm961 = vcmask 1048512
    %v962 = vsel %vm961, %v960, %v955
    %964 = vst [vmem:[#allocation10] sm:$0x1] %v962
    %v965 = vxor.u32 %v305, 2147483648
    %v966 = vxor.u32 %v306, 2147483648
    %v967 = vxor.u32 %v307, 2147483648
    %v968 = vxor.u32 %v308, 2147483648
    %v969 = vxor.u32 %v309, 2147483648
    %v970 = vxor.u32 %v310, 2147483648
    %v971 = vxor.u32 %v311, 2147483648
    %v972 = vxor.u32 %v312, 2147483648
    %v973 = vxor.u32 %v313, 2147483648
    %v974 = vxor.u32 %v314, 2147483648
    %v975 = vxor.u32 %v315, 2147483648
    %v976 = vxor.u32 %v316, 2147483648
    %v977 = vxor.u32 %v317, 2147483648
    %v978 = vxor.u32 %v318, 2147483648
    %v979 = vxor.u32 %v319, 2147483648
    %v980 = vxor.u32 %v320, 2147483648
    %v981 = vmul.f32 %v965, 1.442695
    %v982 = vpow.pop %v981
    %v983 = vmul.f32 %v966, 1.442695
    %v984 = vpow.pop %v983
    %v985 = vmul.f32 %v967, 1.442695
    %v986 = vpow.pop %v985
    %v987 = vmul.f32 %v968, 1.442695
    %v988 = vpow.pop %v987
    %v989 = vmul.f32 %v969, 1.442695
    %v990 = vpow.pop %v989
    %v991 = vmul.f32 %v970, 1.442695
    %v992 = vpow.pop %v991
    %v993 = vmul.f32 %v971, 1.442695
    %v994 = vpow.pop %v993
    %v995 = vmul.f32 %v972, 1.442695
    %v996 = vpow.pop %v995
    %v997 = vmul.f32 %v973, 1.442695
    %v998 = vpow.pop %v997
    %v999 = vmul.f32 %v974, 1.442695
    %v1000 = vpow.pop %v999
    %v1001 = vmul.f32 %v975, 1.442695
    %v1002 = vpow.pop %v1001
    %v1003 = vmul.f32 %v976, 1.442695
    %v1004 = vpow.pop %v1003
    %v1005 = vmul.f32 %v977, 1.442695
    %v1006 = vpow.pop %v1005
    %v1007 = vmul.f32 %v978, 1.442695
    %v1008 = vpow.pop %v1007
    %v1009 = vmul.f32 %v979, 1.442695
    %v1010 = vpow.pop %v1009
    %v1011 = vmul.f32 %v980, 1.442695
    %v1012 = vpow.pop %v1011
    %v1013 = vadd.f32 %v982, 1.0
    %v1014 = vadd.f32 %v984, 1.0
    %v1015 = vadd.f32 %v986, 1.0
    %v1016 = vadd.f32 %v988, 1.0
    %v1017 = vadd.f32 %v990, 1.0
    %v1018 = vadd.f32 %v992, 1.0
    %v1019 = vadd.f32 %v994, 1.0
    %v1020 = vadd.f32 %v996, 1.0
    %v1021 = vadd.f32 %v998, 1.0
    %v1022 = vadd.f32 %v1000, 1.0
    %v1023 = vadd.f32 %v1002, 1.0
    %v1024 = vadd.f32 %v1004, 1.0
    %v1025 = vadd.f32 %v1006, 1.0
    %v1026 = vadd.f32 %v1008, 1.0
    %v1027 = vadd.f32 %v1010, 1.0
    %v1028 = vadd.f32 %v1012, 1.0
    %v1029 = vrcp.pop %v1013
    %v1030 = vmul.f32 1.0, %v1029
    %v1031 = vrcp.pop %v1014
    %v1032 = vmul.f32 1.0, %v1031
    %v1033 = vrcp.pop %v1015
    %v1034 = vmul.f32 1.0, %v1033
    %v1035 = vrcp.pop %v1016
    %v1036 = vmul.f32 1.0, %v1035
    %v1037 = vrcp.pop %v1017
    %v1038 = vmul.f32 1.0, %v1037
    %v1039 = vrcp.pop %v1018
    %v1040 = vmul.f32 1.0, %v1039
    %v1041 = vrcp.pop %v1019
    %v1042 = vmul.f32 1.0, %v1041
    %v1043 = vrcp.pop %v1020
    %v1044 = vmul.f32 1.0, %v1043
    %v1045 = vrcp.pop %v1021
    %v1046 = vmul.f32 1.0, %v1045
    %v1047 = vrcp.pop %v1022
    %v1048 = vmul.f32 1.0, %v1047
    %v1049 = vrcp.pop %v1023
    %v1050 = vmul.f32 1.0, %v1049
    %v1051 = vrcp.pop %v1024
    %v1052 = vmul.f32 1.0, %v1051
    %v1053 = vrcp.pop %v1025
    %v1054 = vmul.f32 1.0, %v1053
    %v1055 = vrcp.pop %v1026
    %v1056 = vmul.f32 1.0, %v1055
    %v1057 = vrcp.pop %v1027
    %v1058 = vmul.f32 1.0, %v1057
    %v1059 = vrcp.pop %v1028
    %v1060 = vmul.f32 1.0, %v1059
    %1077 = vset.pattern.permute.xlu0 32
    %1078 = vperm.xlu0 %1077, %v1030
    %v1079 = vpop.permute.xlu0 %1078
    %1080 = vset.pattern.permute.xlu0 32
    %1081 = vperm.xlu0 %1080, %v1032
    %v1082 = vpop.permute.xlu0 %1081
    %1083 = vset.pattern.permute.xlu0 32
    %1084 = vperm.xlu0 %1083, %v1034
    %v1085 = vpop.permute.xlu0 %1084
    %1086 = vset.pattern.permute.xlu0 32
    %1087 = vperm.xlu0 %1086, %v1036
    %v1088 = vpop.permute.xlu0 %1087
    %1089 = vset.pattern.permute.xlu0 32
    %1090 = vperm.xlu0 %1089, %v1038
    %v1091 = vpop.permute.xlu0 %1090
    %1092 = vset.pattern.permute.xlu0 32
    %1093 = vperm.xlu0 %1092, %v1040
    %v1094 = vpop.permute.xlu0 %1093
    %1095 = vset.pattern.permute.xlu0 32
    %1096 = vperm.xlu0 %1095, %v1042
    %v1097 = vpop.permute.xlu0 %1096
    %1098 = vset.pattern.permute.xlu0 32
    %1099 = vperm.xlu0 %1098, %v1044
    %v1100 = vpop.permute.xlu0 %1099
    %1101 = vset.pattern.permute.xlu0 32
    %1102 = vperm.xlu0 %1101, %v1046
    %v1103 = vpop.permute.xlu0 %1102
    %1104 = vset.pattern.permute.xlu0 32
    %1105 = vperm.xlu0 %1104, %v1048
    %v1106 = vpop.permute.xlu0 %1105
    %1107 = vset.pattern.permute.xlu0 32
    %1108 = vperm.xlu0 %1107, %v1050
    %v1109 = vpop.permute.xlu0 %1108
    %1110 = vset.pattern.permute.xlu0 32
    %1111 = vperm.xlu0 %1110, %v1052
    %v1112 = vpop.permute.xlu0 %1111
    %1113 = vset.pattern.permute.xlu0 32
    %1114 = vperm.xlu0 %1113, %v1054
    %v1115 = vpop.permute.xlu0 %1114
    %1116 = vset.pattern.permute.xlu0 32
    %1117 = vperm.xlu0 %1116, %v1056
    %v1118 = vpop.permute.xlu0 %1117
    %1119 = vset.pattern.permute.xlu0 32
    %1120 = vperm.xlu0 %1119, %v1058
    %v1121 = vpop.permute.xlu0 %1120
    %1122 = vset.pattern.permute.xlu0 32
    %1123 = vperm.xlu0 %1122, %v1060
    %v1124 = vpop.permute.xlu0 %1123
    %v1125 = vlaneseq
    %v1126 = vshrl.u32 %v1125, 7
    %v1127 = vsub.s32 %v853, %v1126
    %v1128 = vrot.slane %v1079, %v1127
    %v1129 = vlaneseq
    %v1130 = vshrl.u32 %v1129, 7
    %v1131 = vsub.s32 %v858, %v1130
    %v1132 = vrot.slane %v1082, %v1131
    %v1133 = vsel %vm863, %v1132, %v1128
    %v1134 = vlaneseq
    %v1135 = vshrl.u32 %v1134, 7
    %v1136 = vsub.s32 %v865, %v1135
    %v1137 = vrot.slane %v1085, %v1136
    %v1138 = vsel %vm870, %v1137, %v1133
    %v1139 = vlaneseq
    %v1140 = vshrl.u32 %v1139, 7
    %v1141 = vsub.s32 %v872, %v1140
    %v1142 = vrot.slane %v1088, %v1141
    %v1143 = vsel %vm877, %v1142, %v1138
    %v1144 = vlaneseq
    %v1145 = vshrl.u32 %v1144, 7
    %v1146 = vsub.s32 %v879, %v1145
    %v1147 = vrot.slane %v1091, %v1146
    %v1148 = vsel %vm884, %v1147, %v1143
    %v1149 = vlaneseq
    %v1150 = vshrl.u32 %v1149, 7
    %v1151 = vsub.s32 %v886, %v1150
    %v1152 = vrot.slane %v1094, %v1151
    %v1153 = vsel %vm891, %v1152, %v1148
    %v1154 = vlaneseq
    %v1155 = vshrl.u32 %v1154, 7
    %v1156 = vsub.s32 %v893, %v1155
    %v1157 = vrot.slane %v1097, %v1156
    %v1158 = vsel %vm898, %v1157, %v1153
    %v1159 = vlaneseq
    %v1160 = vshrl.u32 %v1159, 7
    %v1161 = vsub.s32 %v900, %v1160
    %v1162 = vrot.slane %v1100, %v1161
    %v1163 = vsel %vm905, %v1162, %v1158
    %v1164 = vlaneseq
    %v1165 = vshrl.u32 %v1164, 7
    %v1166 = vsub.s32 %v907, %v1165
    %v1167 = vrot.slane %v1103, %v1166
    %v1168 = vsel %vm912, %v1167, %v1163
    %v1169 = vlaneseq
    %v1170 = vshrl.u32 %v1169, 7
    %v1171 = vsub.s32 %v914, %v1170
    %v1172 = vrot.slane %v1106, %v1171
    %v1173 = vsel %vm919, %v1172, %v1168
    %v1174 = vlaneseq
    %v1175 = vshrl.u32 %v1174, 7
    %v1176 = vsub.s32 %v921, %v1175
    %v1177 = vrot.slane %v1109, %v1176
    %v1178 = vsel %vm926, %v1177, %v1173
    %v1179 = vlaneseq
    %v1180 = vshrl.u32 %v1179, 7
    %v1181 = vsub.s32 %v928, %v1180
    %v1182 = vrot.slane %v1112, %v1181
    %v1183 = vsel %vm933, %v1182, %v1178
    %v1184 = vlaneseq
    %v1185 = vshrl.u32 %v1184, 7
    %v1186 = vsub.s32 %v935, %v1185
    %v1187 = vrot.slane %v1115, %v1186
    %v1188 = vsel %vm940, %v1187, %v1183
    %v1189 = vlaneseq
    %v1190 = vshrl.u32 %v1189, 7
    %v1191 = vsub.s32 %v942, %v1190
    %v1192 = vrot.slane %v1118, %v1191
    %v1193 = vsel %vm947, %v1192, %v1188
    %v1194 = vlaneseq
    %v1195 = vshrl.u32 %v1194, 7
    %v1196 = vsub.s32 %v949, %v1195
    %v1197 = vrot.slane %v1121, %v1196
    %v1198 = vsel %vm954, %v1197, %v1193
    %v1199 = vlaneseq
    %v1200 = vshrl.u32 %v1199, 7
    %v1201 = vsub.s32 %v956, %v1200
    %v1202 = vrot.slane %v1124, %v1201
    %v1203 = vsel %vm961, %v1202, %v1198
    %1205 = vst [vmem:[#allocation11] sm:$0x1] %v1203
    // Predicated region
    $region46: #{tpu_custom_call.1} parent=1 // pred_check
      _
    $region47: #{tpu_custom_call.1} parent=1 // pred_check_branch
      %1207 = sbr.rel (0) target = $region49
    $region48: #{tpu_custom_call.1} parent=1 // pred_region
      %s1209 = ssub.s32 16, 16
      %1210 = vsyncadd [#allocation4], %s1209
      %s1212 = sshll.u32 [#allocation10], 4
      %s1213 = int_to_ptr.vmem [resolvable:$true] %s1212
      %1215 = dma.vmem_to_hbm [thread:$0]  %s1213, 16, %s7, [#allocation4]
    $region49: #{tpu_custom_call.1} parent=1 // pred_fallthru
      _
    // Predicated region
    $region50: #{tpu_custom_call.1} parent=1 // pred_check
      _
    $region51: #{tpu_custom_call.1} parent=1 // pred_check_branch
      %1217 = sbr.rel (0) target = $region53
    $region52: #{tpu_custom_call.1} parent=1 // pred_region
      %s1219 = ssub.s32 16, 16
      %1220 = vsyncadd [#allocation12], %s1219
      %s1222 = sshll.u32 [#allocation11], 4
      %s1223 = int_to_ptr.vmem [resolvable:$true] %s1222
      %1225 = dma.vmem_to_hbm [thread:$0]  %s1223, 16, %s8, [#allocation12]
    $region53: #{tpu_custom_call.1} parent=1 // pred_fallthru
      _
    // Predicated region
    $region54: #{tpu_custom_call.1} parent=1 // pred_check
      _
    $region55: #{tpu_custom_call.1} parent=1 // pred_check_branch
      %1227 = sbr.rel (0) target = $region57
    $region56: #{tpu_custom_call.1} parent=1 // pred_region
      %1228 = dma.done [#allocation4], 16
    $region57: #{tpu_custom_call.1} parent=1 // pred_fallthru
      _
    // Predicated region
    $region58: #{tpu_custom_call.1} parent=1 // pred_check
      _
    $region59: #{tpu_custom_call.1} parent=1 // pred_check_branch
      %1230 = sbr.rel (0) target = $region61
    $region60: #{tpu_custom_call.1} parent=1 // pred_region
      %1231 = dma.done [#allocation12], 16
    $region61: #{tpu_custom_call.1} parent=1 // pred_fallthru
      _
    %1232 = vsyncpa [#allocation3], 1
    %1233 = vsyncpa [#allocation7], 1
    %1234 = vsyncpa [#allocation4], 1
    %1235 = vsyncpa [#allocation12], 1
    %1236 = vsyncpa [#allocation5], 1

// kernel: tpu_custom_call.1
$region0: #{tpu_custom_call.1}
  #allocation0 [shape = 'u32[]', space=smem, size = 0x4, offset = 0x4, fixed_abs, tag = 'smem constant byte address 0x4 - core index']
  #allocation1 [shape = 'u32[144,128]{1,0:T(1,128)}', space=vmem, size = 0x12000, scoped, tag = 'internal scratch']
  %s0 = inlined_call_operand.hbm [shape: f32[16,32], index: 0, kind: input, shape index: {}]
  %s1 = inlined_call_operand.hbm [shape: f32[32,33], index: 1, kind: input, shape index: {}]
  %s2 = inlined_call_operand.vmem [shape: f32[1,33], index: 2, kind: input, shape index: {}]
  %s3 = inlined_call_operand.hbm [shape: f32[32,32], index: 3, kind: input, shape index: {}]
  %s4 = inlined_call_operand.vmem [shape: f32[1,32], index: 4, kind: input, shape index: {}]
  %s5 = inlined_call_operand.vmem [shape: f32[2,32], index: 5, kind: input, shape index: {}]
  %s6 = inlined_call_operand.vmem [shape: f32[2], index: 6, kind: input, shape index: {}]
  %s7 = inlined_call_operand.hbm [shape: f32[1,128], index: 7, kind: output, shape index: {0}]
  %s8 = inlined_call_operand.hbm [shape: f32[1,128], index: 8, kind: output, shape index: {1}]
  %9 = xla_tuple %s7, %s8
  %s10 = sld [smem:[#allocation0]]
  $region62: #{tpu_custom_call.1} parent=0
    _
  %s12 = ssub.s32 1, %s10
  %s13 = scalar_select 0, %s12, %s10
  $region1: #{tpu_custom_call.1} parent=0
    #allocation2 [shape = 'u8[65536]{0}', space=vmem, size = 0x10000, scoped, tag = 'input window, operand 0, single buffered']
    #allocation3 [shape = 's32[1]{0}', space=sflag, size = 0x4, scoped, tag = 'scoped memory for tpu_custom_call.1']
    #allocation4 [shape = 's32[1]{0}', space=sflag, size = 0x4, scoped, tag = 'scoped memory for tpu_custom_call.1']
    #allocation5 [shape = 's32[1]{0}', space=sflag, size = 0x4, scoped, tag = 'scoped memory for tpu_custom_call.1']
    #allocation6 [shape = 'u8[16384]{0}', space=vmem, size = 0x4000, scoped, tag = 'input window, operand 1, single buffered']
    #allocation7 [shape = 's32[1]{0}', space=sflag, size = 0x4, scoped, tag = 'scoped memory for tpu_custom_call.1']
    #allocation8 [shape = 'u8[16384]{0}', space=vmem, size = 0x4000, scoped, tag = 'input window, operand 3, single buffered']
    #allocation9 [shape = 'u8[512]{0}', space=smem, size = 0x200, scoped, tag = 'input window, operand 6, single buffered']
    #allocation10 [shape = 'u8[512]{0}', space=vmem, size = 0x400, scoped, tag = 'output window, operand 0, single buffered']
    #allocation11 [shape = 'u8[512]{0}', space=vmem, size = 0x400, scoped, tag = 'output window, operand 1, single buffered']
    #allocation12 [shape = 's32[1]{0}', space=sflag, size = 0x4, scoped, tag = 'scoped memory for tpu_custom_call.1']
    %14 = vsyncpa [#allocation3], 0
    %15 = vsyncpa [#allocation7], 0
    %16 = vsyncpa [#allocation5], 0
    %17 = vsyncpa [#allocation4], 0
    %18 = vsyncpa [#allocation12], 0
    // Predicated region
    $region2: #{tpu_custom_call.1} parent=1 // pred_check
      _
    $region3: #{tpu_custom_call.1} parent=1 // pred_check_branch
      %20 = sbr.rel (0) target = $region5
    $region4: #{tpu_custom_call.1} parent=1 // pred_region
      %s22 = ssub.s32 2048, 256
      %23 = vsyncadd [#allocation3], %s22
      %s24 = sshll.u32 [#allocation2], 4
      %s25 = int_to_ptr.vmem [resolvable:$true] %s24
      %30 = dma.hbm_to_vmem [thread:$0]  %s0, 256, %s25, [#allocation3], 128, 128, 8
    $region5: #{tpu_custom_call.1} parent=1 // pred_fallthru
      _
    // Predicated region
    $region6: #{tpu_custom_call.1} parent=1 // pred_check
      _
    $region7: #{tpu_custom_call.1} parent=1 // pred_check_branch
      %32 = sbr.rel (0) target = $region9
    $region8: #{tpu_custom_call.1} parent=1 // pred_region
      %s34 = ssub.s32 512, 512
      %35 = vsyncadd [#allocation7], %s34
      %s36 = sshll.u32 [#allocation6], 4
      %s37 = int_to_ptr.vmem [resolvable:$true] %s36
      %42 = dma.hbm_to_vmem [thread:$0]  %s1, 512, %s37, [#allocation7], 128, 128, 8
    $region9: #{tpu_custom_call.1} parent=1 // pred_fallthru
      _
    // Predicated region
    $region10: #{tpu_custom_call.1} parent=1 // pred_check
      _
    $region11: #{tpu_custom_call.1} parent=1 // pred_check_branch
      %44 = sbr.rel (0) target = $region13
    $region12: #{tpu_custom_call.1} parent=1 // pred_region
      _
    $region13: #{tpu_custom_call.1} parent=1 // pred_fallthru
      _
    // Predicated region
    $region14: #{tpu_custom_call.1} parent=1 // pred_check
      _
    $region15: #{tpu_custom_call.1} parent=1 // pred_check_branch
      %46 = sbr.rel (0) target = $region17
    $region16: #{tpu_custom_call.1} parent=1 // pred_region
      %s48 = ssub.s32 512, 512
      %49 = vsyncadd [#allocation7], %s48
      %s50 = sshll.u32 [#allocation8], 4
      %s51 = int_to_ptr.vmem [resolvable:$true] %s50
      %56 = dma.hbm_to_vmem [thread:$0]  %s3, 512, %s51, [#allocation7], 128, 128, 8
    $region17: #{tpu_custom_call.1} parent=1 // pred_fallthru
      _
    // Predicated region
    $region18: #{tpu_custom_call.1} parent=1 // pred_check
      _
    $region19: #{tpu_custom_call.1} parent=1 // pred_check_branch
      %58 = sbr.rel (0) target = $region21
    $region20: #{tpu_custom_call.1} parent=1 // pred_region
      _
    $region21: #{tpu_custom_call.1} parent=1 // pred_fallthru
      _
    // Predicated region
    $region22: #{tpu_custom_call.1} parent=1 // pred_check
      _
    $region23: #{tpu_custom_call.1} parent=1 // pred_check_branch
      %60 = sbr.rel (0) target = $region25
    $region24: #{tpu_custom_call.1} parent=1 // pred_region
      _
    $region25: #{tpu_custom_call.1} parent=1 // pred_fallthru
      _
    // Predicated region
    $region26: #{tpu_custom_call.1} parent=1 // pred_check
      _
    $region27: #{tpu_custom_call.1} parent=1 // pred_check_branch
      %62 = sbr.rel (0) target = $region29
    $region28: #{tpu_custom_call.1} parent=1 // pred_region
      %s64 = ssub.s32 16, 16
      %65 = vsyncadd [#allocation5], %s64
      %s67 = sshll.u32 %s6, 4
      %s68 = int_to_ptr.vmem [resolvable:$true] %s67
      %70 = dma.vmem_to_smem %s68, 16, [#allocation9], [#allocation5]
    $region29: #{tpu_custom_call.1} parent=1 // pred_fallthru
      _
    // Predicated region
    $region30: #{tpu_custom_call.1} parent=1 // pred_check
      _
    $region31: #{tpu_custom_call.1} parent=1 // pred_check_branch
      %72 = sbr.rel (0) target = $region33
    $region32: #{tpu_custom_call.1} parent=1 // pred_region
      %73 = dma.done [#allocation3], 2048
    $region33: #{tpu_custom_call.1} parent=1 // pred_fallthru
      _
    // Predicated region
    $region34: #{tpu_custom_call.1} parent=1 // pred_check
      _
    $region35: #{tpu_custom_call.1} parent=1 // pred_check_branch
      %75 = sbr.rel (0) target = $region37
    $region36: #{tpu_custom_call.1} parent=1 // pred_region
      %76 = dma.done [#allocation7], 512
    $region37: #{tpu_custom_call.1} parent=1 // pred_fallthru
      _
    // Predicated region
    $region38: #{tpu_custom_call.1} parent=1 // pred_check
      _
    $region39: #{tpu_custom_call.1} parent=1 // pred_check_branch
      %78 = sbr.rel (0) target = $region41
    $region40: #{tpu_custom_call.1} parent=1 // pred_region
      %79 = dma.done [#allocation7], 512
    $region41: #{tpu_custom_call.1} parent=1 // pred_fallthru
      _
    // Predicated region
    $region42: #{tpu_custom_call.1} parent=1 // pred_check
      _
    $region43: #{tpu_custom_call.1} parent=1 // pred_check_branch
      %81 = sbr.rel (0) target = $region45
    $region44: #{tpu_custom_call.1} parent=1 // pred_region
      %82 = dma.done [#allocation5], 16
    $region45: #{tpu_custom_call.1} parent=1 // pred_fallthru
      _
    %83 = sfence
    %v84 = vld [vmem:[#allocation2] sm:$0xff]
    %v85 = vld [vmem:[#allocation2 + $0x8] sm:$0xff]
    %v86 = vld [vmem:[#allocation2 + $0x10] sm:$0xff]
    %v87 = vld [vmem:[#allocation2 + $0x18] sm:$0xff]
    %v88 = vld [vmem:[#allocation2 + $0x20] sm:$0xff]
    %v89 = vld [vmem:[#allocation2 + $0x28] sm:$0xff]
    %v90 = vld [vmem:[#allocation2 + $0x30] sm:$0xff]
    %v91 = vld [vmem:[#allocation2 + $0x38] sm:$0xff]
    %v92 = vld [vmem:[#allocation2 + $0x40] sm:$0xff]
    %v93 = vld [vmem:[#allocation2 + $0x48] sm:$0xff]
    %v94 = vld [vmem:[#allocation2 + $0x50] sm:$0xff]
    %v95 = vld [vmem:[#allocation2 + $0x58] sm:$0xff]
    %v96 = vld [vmem:[#allocation2 + $0x60] sm:$0xff]
    %v97 = vld [vmem:[#allocation2 + $0x68] sm:$0xff]
    %v98 = vld [vmem:[#allocation2 + $0x70] sm:$0xff]
    %v99 = vld [vmem:[#allocation2 + $0x78] sm:$0xff]
    %v100 = vld [vmem:[#allocation6] sm:$0xff]
    %v101 = vld [vmem:[#allocation6 + $0x8] sm:$0xff]
    %v102 = vld [vmem:[#allocation6 + $0x10] sm:$0xff]
    %v103 = vld [vmem:[#allocation6 + $0x18] sm:$0xff]
    %v104 = vld [vmem:[%s2] sm:$0x1]
    %v106 = vlaneseq
    %v107 = vshrl.u32 %v106, 7
    %v108 = vsub.s32 0, %v107
    %v109 = vrot.slane %v104, %v108
    %vm111 = vcmask 261120
    %v113 = vsel %vm111, %v84, 0
    %v116 = vsel %vm111, %v85, 0
    %v119 = vsel %vm111, %v86, 0
    %v122 = vsel %vm111, %v87, 0
    %v125 = vsel %vm111, %v88, 0
    %v128 = vsel %vm111, %v89, 0
    %v131 = vsel %vm111, %v90, 0
    %v134 = vsel %vm111, %v91, 0
    %v137 = vsel %vm111, %v92, 0
    %v140 = vsel %vm111, %v93, 0
    %v143 = vsel %vm111, %v94, 0
    %v146 = vsel %vm111, %v95, 0
    %v149 = vsel %vm111, %v96, 0
    %v152 = vsel %vm111, %v97, 0
    %v155 = vsel %vm111, %v98, 0
    %v158 = vsel %vm111, %v99, 0
    %160 = vmatprep.subr.mxu0 0.0
    %161 = vmatpush1.msra.mxu0 %v100
    %162 = vmatprep.subr.mxu0 0.0
    %163 = vmatpush1.msra.mxu0 %v101
    %164 = vmatprep.subr.mxu0 0.0
    %165 = vmatpush1.msra.mxu0 %v102
    %166 = vmatprep.subr.mxu0 0.0
    %167 = vmatpush1.msra.mxu0 %v103
    %168 = vmatprep.subr.mxu0 0.0
    %169 = vmatpush1.msra.mxu0 0.0
    %170 = vmatprep.subr.mxu0 0.0
    %171 = vmatpush1.msra.mxu0 0.0
    %172 = vmatprep.subr.mxu0 0.0
    %173 = vmatpush1.msra.mxu0 0.0
    %174 = vmatprep.subr.mxu0 0.0
    %175 = vmatpush1.msra.mxu0 0.0
    %176 = vmatprep.subr.mxu0 0.0
    %177 = vmatpush1.msra.mxu0 0.0
    %178 = vmatprep.subr.mxu0 0.0
    %179 = vmatpush1.msra.mxu0 0.0
    %180 = vmatprep.subr.mxu0 0.0
    %181 = vmatpush1.msra.mxu0 0.0
    %182 = vmatprep.subr.mxu0 0.0
    %183 = vmatpush1.msra.mxu0 0.0
    %184 = vmatprep.subr.mxu0 0.0
    %185 = vmatpush1.msra.mxu0 0.0
    %186 = vmatprep.subr.mxu0 0.0
    %187 = vmatpush1.msra.mxu0 0.0
    %188 = vmatprep.subr.mxu0 0.0
    %189 = vmatpush1.msra.mxu0 0.0
    %190 = vmatprep.subr.mxu0 0.0
    %191 = vmatpush1.msra.mxu0 0.0
    %192 = vmatprep.subr.mxu0 0.0
    %193 = vmatpush1.msra.mxu0 0.0
    %194 = vmatprep.subr.mxu0 0.0
    %195 = vmatpush1.msra.mxu0 0.0
    %196 = vmatprep.subr.mxu0 0.0
    %197 = vmatpush1.msra.mxu0 0.0
    %198 = vmatprep.subr.mxu0 0.0
    %199 = vmatpush1.msra.mxu0 0.0
    %200 = vmatprep.subr.mxu0 0.0
    %201 = vmatpush1.msra.mxu0 0.0
    %202 = vmatprep.subr.mxu0 0.0
    %203 = vmatpush1.msra.mxu0 0.0
    %204 = vmatprep.subr.mxu0 0.0
    %205 = vmatpush1.msra.mxu0 0.0
    %206 = vmatprep.subr.mxu0 0.0
    %207 = vmatpush1.msra.mxu0 0.0
    %208 = vmatprep.subr.mxu0 0.0
    %209 = vmatpush1.msra.mxu0 0.0
    %210 = vmatprep.subr.mxu0 0.0
    %211 = vmatpush1.msra.mxu0 0.0
    %212 = vmatprep.subr.mxu0 0.0
    %213 = vmatpush1.msra.mxu0 0.0
    %214 = vmatprep.subr.mxu0 0.0
    %215 = vmatpush1.msra.mxu0 0.0
    %216 = vmatprep.subr.mxu0 0.0
    %217 = vmatpush1.msra.mxu0 0.0
    %218 = vmatprep.subr.mxu0 0.0
    %219 = vmatpush1.msra.mxu0 0.0
    %220 = vmatprep.subr.mxu0 0.0
    %221 = vmatpush1.msra.mxu0 0.0
    %222 = vmatprep.subr.mxu0 0.0
    %223 = vmatpush1.msra.mxu0 0.0
    %224 = vmatprep.mubr.f32.mxu0 0.0
    %225 = vmatmul.mubr.f32.gmra.mrb[0].mxu0 %v113
    %v226 = vpop.f32.mrb[0].mxu0
    %v227 = vadd.f32 %v109, %v226
    %v228 = vpop.f32.mrb[0].mxu0
    %229 = vmatprep.mubr.f32.mxu0 0.0
    %230 = vmatmul.mubr.f32.gmra.mrb[0].mxu0 %v116
    %v231 = vpop.f32.mrb[0].mxu0
    %v232 = vadd.f32 %v109, %v231
    %v233 = vpop.f32.mrb[0].mxu0
    %234 = vmatprep.mubr.f32.mxu0 0.0
    %235 = vmatmul.mubr.f32.gmra.mrb[0].mxu0 %v119
    %v236 = vpop.f32.mrb[0].mxu0
    %v237 = vadd.f32 %v109, %v236
    %v238 = vpop.f32.mrb[0].mxu0
    %239 = vmatprep.mubr.f32.mxu0 0.0
    %240 = vmatmul.mubr.f32.gmra.mrb[0].mxu0 %v122
    %v241 = vpop.f32.mrb[0].mxu0
    %v242 = vadd.f32 %v109, %v241
    %v243 = vpop.f32.mrb[0].mxu0
    %244 = vmatprep.mubr.f32.mxu0 0.0
    %245 = vmatmul.mubr.f32.gmra.mrb[0].mxu0 %v125
    %v246 = vpop.f32.mrb[0].mxu0
    %v247 = vadd.f32 %v109, %v246
    %v248 = vpop.f32.mrb[0].mxu0
    %249 = vmatprep.mubr.f32.mxu0 0.0
    %250 = vmatmul.mubr.f32.gmra.mrb[0].mxu0 %v128
    %v251 = vpop.f32.mrb[0].mxu0
    %v252 = vadd.f32 %v109, %v251
    %v253 = vpop.f32.mrb[0].mxu0
    %254 = vmatprep.mubr.f32.mxu0 0.0
    %255 = vmatmul.mubr.f32.gmra.mrb[0].mxu0 %v131
    %v256 = vpop.f32.mrb[0].mxu0
    %v257 = vadd.f32 %v109, %v256
    %v258 = vpop.f32.mrb[0].mxu0
    %259 = vmatprep.mubr.f32.mxu0 0.0
    %260 = vmatmul.mubr.f32.gmra.mrb[0].mxu0 %v134
    %v261 = vpop.f32.mrb[0].mxu0
    %v262 = vadd.f32 %v109, %v261
    %v263 = vpop.f32.mrb[0].mxu0
    %264 = vmatprep.mubr.f32.mxu0 0.0
    %265 = vmatmul.mubr.f32.gmra.mrb[0].mxu0 %v137
    %v266 = vpop.f32.mrb[0].mxu0
    %v267 = vadd.f32 %v109, %v266
    %v268 = vpop.f32.mrb[0].mxu0
    %269 = vmatprep.mubr.f32.mxu0 0.0
    %270 = vmatmul.mubr.f32.gmra.mrb[0].mxu0 %v140
    %v271 = vpop.f32.mrb[0].mxu0
    %v272 = vadd.f32 %v109, %v271
    %v273 = vpop.f32.mrb[0].mxu0
    %274 = vmatprep.mubr.f32.mxu0 0.0
    %275 = vmatmul.mubr.f32.gmra.mrb[0].mxu0 %v143
    %v276 = vpop.f32.mrb[0].mxu0
    %v277 = vadd.f32 %v109, %v276
    %v278 = vpop.f32.mrb[0].mxu0
    %279 = vmatprep.mubr.f32.mxu0 0.0
    %280 = vmatmul.mubr.f32.gmra.mrb[0].mxu0 %v146
    %v281 = vpop.f32.mrb[0].mxu0
    %v282 = vadd.f32 %v109, %v281
    %v283 = vpop.f32.mrb[0].mxu0
    %284 = vmatprep.mubr.f32.mxu0 0.0
    %285 = vmatmul.mubr.f32.gmra.mrb[0].mxu0 %v149
    %v286 = vpop.f32.mrb[0].mxu0
    %v287 = vadd.f32 %v109, %v286
    %v288 = vpop.f32.mrb[0].mxu0
    %289 = vmatprep.mubr.f32.mxu0 0.0
    %290 = vmatmul.mubr.f32.gmra.mrb[0].mxu0 %v152
    %v291 = vpop.f32.mrb[0].mxu0
    %v292 = vadd.f32 %v109, %v291
    %v293 = vpop.f32.mrb[0].mxu0
    %294 = vmatprep.mubr.f32.mxu0 0.0
    %295 = vmatmul.mubr.f32.gmra.mrb[0].mxu0 %v155
    %v296 = vpop.f32.mrb[0].mxu0
    %v297 = vadd.f32 %v109, %v296
    %v298 = vpop.f32.mrb[0].mxu0
    %299 = vmatprep.mubr.f32.mxu0 0.0
    %300 = vmatmul.mubr.f32.gmra.mrb[0].mxu0 %v158
    %v301 = vpop.f32.mrb[0].mxu0
    %v302 = vadd.f32 %v109, %v301
    %v303 = vpop.f32.mrb[0].mxu0
    %304 = vdwg.mxu0
    %v305 = vadd.f32 %v227, 0.0
    %v306 = vadd.f32 %v232, 0.0
    %v307 = vadd.f32 %v237, 0.0
    %v308 = vadd.f32 %v242, 0.0
    %v309 = vadd.f32 %v247, 0.0
    %v310 = vadd.f32 %v252, 0.0
    %v311 = vadd.f32 %v257, 0.0
    %v312 = vadd.f32 %v262, 0.0
    %v313 = vadd.f32 %v267, 0.0
    %v314 = vadd.f32 %v272, 0.0
    %v315 = vadd.f32 %v277, 0.0
    %v316 = vadd.f32 %v282, 0.0
    %v317 = vadd.f32 %v287, 0.0
    %v318 = vadd.f32 %v292, 0.0
    %v319 = vadd.f32 %v297, 0.0
    %v320 = vadd.f32 %v302, 0.0
    %v321 = vxor.u32 %v227, 2147483648
    %v322 = vxor.u32 %v232, 2147483648
    %v323 = vxor.u32 %v237, 2147483648
    %v324 = vxor.u32 %v242, 2147483648
    %v325 = vxor.u32 %v247, 2147483648
    %v326 = vxor.u32 %v252, 2147483648
    %v327 = vxor.u32 %v257, 2147483648
    %v328 = vxor.u32 %v262, 2147483648
    %v329 = vxor.u32 %v267, 2147483648
    %v330 = vxor.u32 %v272, 2147483648
    %v331 = vxor.u32 %v277, 2147483648
    %v332 = vxor.u32 %v282, 2147483648
    %v333 = vxor.u32 %v287, 2147483648
    %v334 = vxor.u32 %v292, 2147483648
    %v335 = vxor.u32 %v297, 2147483648
    %v336 = vxor.u32 %v302, 2147483648
    %v337 = vmul.f32 %v321, 1.442695
    %v338 = vpow.pop %v337
    %v339 = vmul.f32 %v322, 1.442695
    %v340 = vpow.pop %v339
    %v341 = vmul.f32 %v323, 1.442695
    %v342 = vpow.pop %v341
    %v343 = vmul.f32 %v324, 1.442695
    %v344 = vpow.pop %v343
    %v345 = vmul.f32 %v325, 1.442695
    %v346 = vpow.pop %v345
    %v347 = vmul.f32 %v326, 1.442695
    %v348 = vpow.pop %v347
    %v349 = vmul.f32 %v327, 1.442695
    %v350 = vpow.pop %v349
    %v351 = vmul.f32 %v328, 1.442695
    %v352 = vpow.pop %v351
    %v353 = vmul.f32 %v329, 1.442695
    %v354 = vpow.pop %v353
    %v355 = vmul.f32 %v330, 1.442695
    %v356 = vpow.pop %v355
    %v357 = vmul.f32 %v331, 1.442695
    %v358 = vpow.pop %v357
    %v359 = vmul.f32 %v332, 1.442695
    %v360 = vpow.pop %v359
    %v361 = vmul.f32 %v333, 1.442695
    %v362 = vpow.pop %v361
    %v363 = vmul.f32 %v334, 1.442695
    %v364 = vpow.pop %v363
    %v365 = vmul.f32 %v335, 1.442695
    %v366 = vpow.pop %v365
    %v367 = vmul.f32 %v336, 1.442695
    %v368 = vpow.pop %v367
    %v369 = vadd.f32 %v338, 1.0
    %v370 = vadd.f32 %v340, 1.0
    %v371 = vadd.f32 %v342, 1.0
    %v372 = vadd.f32 %v344, 1.0
    %v373 = vadd.f32 %v346, 1.0
    %v374 = vadd.f32 %v348, 1.0
    %v375 = vadd.f32 %v350, 1.0
    %v376 = vadd.f32 %v352, 1.0
    %v377 = vadd.f32 %v354, 1.0
    %v378 = vadd.f32 %v356, 1.0
    %v379 = vadd.f32 %v358, 1.0
    %v380 = vadd.f32 %v360, 1.0
    %v381 = vadd.f32 %v362, 1.0
    %v382 = vadd.f32 %v364, 1.0
    %v383 = vadd.f32 %v366, 1.0
    %v384 = vadd.f32 %v368, 1.0
    %v385 = vrcp.pop %v369
    %v386 = vmul.f32 1.0, %v385
    %v387 = vrcp.pop %v370
    %v388 = vmul.f32 1.0, %v387
    %v389 = vrcp.pop %v371
    %v390 = vmul.f32 1.0, %v389
    %v391 = vrcp.pop %v372
    %v392 = vmul.f32 1.0, %v391
    %v393 = vrcp.pop %v373
    %v394 = vmul.f32 1.0, %v393
    %v395 = vrcp.pop %v374
    %v396 = vmul.f32 1.0, %v395
    %v397 = vrcp.pop %v375
    %v398 = vmul.f32 1.0, %v397
    %v399 = vrcp.pop %v376
    %v400 = vmul.f32 1.0, %v399
    %v401 = vrcp.pop %v377
    %v402 = vmul.f32 1.0, %v401
    %v403 = vrcp.pop %v378
    %v404 = vmul.f32 1.0, %v403
    %v405 = vrcp.pop %v379
    %v406 = vmul.f32 1.0, %v405
    %v407 = vrcp.pop %v380
    %v408 = vmul.f32 1.0, %v407
    %v409 = vrcp.pop %v381
    %v410 = vmul.f32 1.0, %v409
    %v411 = vrcp.pop %v382
    %v412 = vmul.f32 1.0, %v411
    %v413 = vrcp.pop %v383
    %v414 = vmul.f32 1.0, %v413
    %v415 = vrcp.pop %v384
    %v416 = vmul.f32 1.0, %v415
    %v417 = vmul.f32 %v227, %v386
    %v418 = vmul.f32 %v232, %v388
    %v419 = vmul.f32 %v237, %v390
    %v420 = vmul.f32 %v242, %v392
    %v421 = vmul.f32 %v247, %v394
    %v422 = vmul.f32 %v252, %v396
    %v423 = vmul.f32 %v257, %v398
    %v424 = vmul.f32 %v262, %v400
    %v425 = vmul.f32 %v267, %v402
    %v426 = vmul.f32 %v272, %v404
    %v427 = vmul.f32 %v277, %v406
    %v428 = vmul.f32 %v282, %v408
    %v429 = vmul.f32 %v287, %v410
    %v430 = vmul.f32 %v292, %v412
    %v431 = vmul.f32 %v297, %v414
    %v432 = vmul.f32 %v302, %v416
    %v433 = vld [vmem:[#allocation8] sm:$0xff]
    %v434 = vld [vmem:[#allocation8 + $0x8] sm:$0xff]
    %v435 = vld [vmem:[#allocation8 + $0x10] sm:$0xff]
    %v436 = vld [vmem:[#allocation8 + $0x18] sm:$0xff]
    %v437 = vld [vmem:[%s4] sm:$0x1]
    %v439 = vlaneseq
    %v440 = vshrl.u32 %v439, 7
    %v441 = vsub.s32 0, %v440
    %v442 = vrot.slane %v437, %v441
    %v445 = vsel %vm111, %v417, 0
    %v448 = vsel %vm111, %v418, 0
    %v451 = vsel %vm111, %v419, 0
    %v454 = vsel %vm111, %v420, 0
    %v457 = vsel %vm111, %v421, 0
    %v460 = vsel %vm111, %v422, 0
    %v463 = vsel %vm111, %v423, 0
    %v466 = vsel %vm111, %v424, 0
    %v469 = vsel %vm111, %v425, 0
    %v472 = vsel %vm111, %v426, 0
    %v475 = vsel %vm111, %v427, 0
    %v478 = vsel %vm111, %v428, 0
    %v481 = vsel %vm111, %v429, 0
    %v484 = vsel %vm111, %v430, 0
    %v487 = vsel %vm111, %v431, 0
    %v490 = vsel %vm111, %v432, 0
    %492 = vmatprep.subr.mxu0 0.0
    %493 = vmatpush1.msra.mxu0 %v433
    %494 = vmatprep.subr.mxu0 0.0
    %495 = vmatpush1.msra.mxu0 %v434
    %496 = vmatprep.subr.mxu0 0.0
    %497 = vmatpush1.msra.mxu0 %v435
    %498 = vmatprep.subr.mxu0 0.0
    %499 = vmatpush1.msra.mxu0 %v436
    %500 = vmatprep.subr.mxu0 0.0
    %501 = vmatpush1.msra.mxu0 0.0
    %502 = vmatprep.subr.mxu0 0.0
    %503 = vmatpush1.msra.mxu0 0.0
    %504 = vmatprep.subr.mxu0 0.0
    %505 = vmatpush1.msra.mxu0 0.0
    %506 = vmatprep.subr.mxu0 0.0
    %507 = vmatpush1.msra.mxu0 0.0
    %508 = vmatprep.subr.mxu0 0.0
    %509 = vmatpush1.msra.mxu0 0.0
    %510 = vmatprep.subr.mxu0 0.0
    %511 = vmatpush1.msra.mxu0 0.0
    %512 = vmatprep.subr.mxu0 0.0
    %513 = vmatpush1.msra.mxu0 0.0
    %514 = vmatprep.subr.mxu0 0.0
    %515 = vmatpush1.msra.mxu0 0.0
    %516 = vmatprep.subr.mxu0 0.0
    %517 = vmatpush1.msra.mxu0 0.0
    %518 = vmatprep.subr.mxu0 0.0
    %519 = vmatpush1.msra.mxu0 0.0
    %520 = vmatprep.subr.mxu0 0.0
    %521 = vmatpush1.msra.mxu0 0.0
    %522 = vmatprep.subr.mxu0 0.0
    %523 = vmatpush1.msra.mxu0 0.0
    %524 = vmatprep.subr.mxu0 0.0
    %525 = vmatpush1.msra.mxu0 0.0
    %526 = vmatprep.subr.mxu0 0.0
    %527 = vmatpush1.msra.mxu0 0.0
    %528 = vmatprep.subr.mxu0 0.0
    %529 = vmatpush1.msra.mxu0 0.0
    %530 = vmatprep.subr.mxu0 0.0
    %531 = vmatpush1.msra.mxu0 0.0
    %532 = vmatprep.subr.mxu0 0.0
    %533 = vmatpush1.msra.mxu0 0.0
    %534 = vmatprep.subr.mxu0 0.0
    %535 = vmatpush1.msra.mxu0 0.0
    %536 = vmatprep.subr.mxu0 0.0
    %537 = vmatpush1.msra.mxu0 0.0
    %538 = vmatprep.subr.mxu0 0.0
    %539 = vmatpush1.msra.mxu0 0.0
    %540 = vmatprep.subr.mxu0 0.0
    %541 = vmatpush1.msra.mxu0 0.0
    %542 = vmatprep.subr.mxu0 0.0
    %543 = vmatpush1.msra.mxu0 0.0
    %544 = vmatprep.subr.mxu0 0.0
    %545 = vmatpush1.msra.mxu0 0.0
    %546 = vmatprep.subr.mxu0 0.0
    %547 = vmatpush1.msra.mxu0 0.0
    %548 = vmatprep.subr.mxu0 0.0
    %549 = vmatpush1.msra.mxu0 0.0
    %550 = vmatprep.subr.mxu0 0.0
    %551 = vmatpush1.msra.mxu0 0.0
    %552 = vmatprep.subr.mxu0 0.0
    %553 = vmatpush1.msra.mxu0 0.0
    %554 = vmatprep.subr.mxu0 0.0
    %555 = vmatpush1.msra.mxu0 0.0
    %556 = vmatprep.mubr.f32.mxu0 0.0
    %557 = vmatmul.mubr.f32.gmra.mrb[0].mxu0 %v445
    %v558 = vpop.f32.mrb[0].mxu0
    %v559 = vadd.f32 %v442, %v558
    %v560 = vpop.f32.mrb[0].mxu0
    %561 = vmatprep.mubr.f32.mxu0 0.0
    %562 = vmatmul.mubr.f32.gmra.mrb[0].mxu0 %v448
    %v563 = vpop.f32.mrb[0].mxu0
    %v564 = vadd.f32 %v442, %v563
    %v565 = vpop.f32.mrb[0].mxu0
    %566 = vmatprep.mubr.f32.mxu0 0.0
    %567 = vmatmul.mubr.f32.gmra.mrb[0].mxu0 %v451
    %v568 = vpop.f32.mrb[0].mxu0
    %v569 = vadd.f32 %v442, %v568
    %v570 = vpop.f32.mrb[0].mxu0
    %571 = vmatprep.mubr.f32.mxu0 0.0
    %572 = vmatmul.mubr.f32.gmra.mrb[0].mxu0 %v454
    %v573 = vpop.f32.mrb[0].mxu0
    %v574 = vadd.f32 %v442, %v573
    %v575 = vpop.f32.mrb[0].mxu0
    %576 = vmatprep.mubr.f32.mxu0 0.0
    %577 = vmatmul.mubr.f32.gmra.mrb[0].mxu0 %v457
    %v578 = vpop.f32.mrb[0].mxu0
    %v579 = vadd.f32 %v442, %v578
    %v580 = vpop.f32.mrb[0].mxu0
    %581 = vmatprep.mubr.f32.mxu0 0.0
    %582 = vmatmul.mubr.f32.gmra.mrb[0].mxu0 %v460
    %v583 = vpop.f32.mrb[0].mxu0
    %v584 = vadd.f32 %v442, %v583
    %v585 = vpop.f32.mrb[0].mxu0
    %586 = vmatprep.mubr.f32.mxu0 0.0
    %587 = vmatmul.mubr.f32.gmra.mrb[0].mxu0 %v463
    %v588 = vpop.f32.mrb[0].mxu0
    %v589 = vadd.f32 %v442, %v588
    %v590 = vpop.f32.mrb[0].mxu0
    %591 = vmatprep.mubr.f32.mxu0 0.0
    %592 = vmatmul.mubr.f32.gmra.mrb[0].mxu0 %v466
    %v593 = vpop.f32.mrb[0].mxu0
    %v594 = vadd.f32 %v442, %v593
    %v595 = vpop.f32.mrb[0].mxu0
    %596 = vmatprep.mubr.f32.mxu0 0.0
    %597 = vmatmul.mubr.f32.gmra.mrb[0].mxu0 %v469
    %v598 = vpop.f32.mrb[0].mxu0
    %v599 = vadd.f32 %v442, %v598
    %v600 = vpop.f32.mrb[0].mxu0
    %601 = vmatprep.mubr.f32.mxu0 0.0
    %602 = vmatmul.mubr.f32.gmra.mrb[0].mxu0 %v472
    %v603 = vpop.f32.mrb[0].mxu0
    %v604 = vadd.f32 %v442, %v603
    %v605 = vpop.f32.mrb[0].mxu0
    %606 = vmatprep.mubr.f32.mxu0 0.0
    %607 = vmatmul.mubr.f32.gmra.mrb[0].mxu0 %v475
    %v608 = vpop.f32.mrb[0].mxu0
    %v609 = vadd.f32 %v442, %v608
    %v610 = vpop.f32.mrb[0].mxu0
    %611 = vmatprep.mubr.f32.mxu0 0.0
    %612 = vmatmul.mubr.f32.gmra.mrb[0].mxu0 %v478
    %v613 = vpop.f32.mrb[0].mxu0
    %v614 = vadd.f32 %v442, %v613
    %v615 = vpop.f32.mrb[0].mxu0
    %616 = vmatprep.mubr.f32.mxu0 0.0
    %617 = vmatmul.mubr.f32.gmra.mrb[0].mxu0 %v481
    %v618 = vpop.f32.mrb[0].mxu0
    %v619 = vadd.f32 %v442, %v618
    %v620 = vpop.f32.mrb[0].mxu0
    %621 = vmatprep.mubr.f32.mxu0 0.0
    %622 = vmatmul.mubr.f32.gmra.mrb[0].mxu0 %v484
    %v623 = vpop.f32.mrb[0].mxu0
    %v624 = vadd.f32 %v442, %v623
    %v625 = vpop.f32.mrb[0].mxu0
    %626 = vmatprep.mubr.f32.mxu0 0.0
    %627 = vmatmul.mubr.f32.gmra.mrb[0].mxu0 %v487
    %v628 = vpop.f32.mrb[0].mxu0
    %v629 = vadd.f32 %v442, %v628
    %v630 = vpop.f32.mrb[0].mxu0
    %631 = vmatprep.mubr.f32.mxu0 0.0
    %632 = vmatmul.mubr.f32.gmra.mrb[0].mxu0 %v490
    %v633 = vpop.f32.mrb[0].mxu0
    %v634 = vadd.f32 %v442, %v633
    %v635 = vpop.f32.mrb[0].mxu0
    %636 = vdwg.mxu0
    %v637 = vxor.u32 %v559, 2147483648
    %v638 = vxor.u32 %v564, 2147483648
    %v639 = vxor.u32 %v569, 2147483648
    %v640 = vxor.u32 %v574, 2147483648
    %v641 = vxor.u32 %v579, 2147483648
    %v642 = vxor.u32 %v584, 2147483648
    %v643 = vxor.u32 %v589, 2147483648
    %v644 = vxor.u32 %v594, 2147483648
    %v645 = vxor.u32 %v599, 2147483648
    %v646 = vxor.u32 %v604, 2147483648
    %v647 = vxor.u32 %v609, 2147483648
    %v648 = vxor.u32 %v614, 2147483648
    %v649 = vxor.u32 %v619, 2147483648
    %v650 = vxor.u32 %v624, 2147483648
    %v651 = vxor.u32 %v629, 2147483648
    %v652 = vxor.u32 %v634, 2147483648
    %v653 = vmul.f32 %v637, 1.442695
    %v654 = vpow.pop %v653
    %v655 = vmul.f32 %v638, 1.442695
    %v656 = vpow.pop %v655
    %v657 = vmul.f32 %v639, 1.442695
    %v658 = vpow.pop %v657
    %v659 = vmul.f32 %v640, 1.442695
    %v660 = vpow.pop %v659
    %v661 = vmul.f32 %v641, 1.442695
    %v662 = vpow.pop %v661
    %v663 = vmul.f32 %v642, 1.442695
    %v664 = vpow.pop %v663
    %v665 = vmul.f32 %v643, 1.442695
    %v666 = vpow.pop %v665
    %v667 = vmul.f32 %v644, 1.442695
    %v668 = vpow.pop %v667
    %v669 = vmul.f32 %v645, 1.442695
    %v670 = vpow.pop %v669
    %v671 = vmul.f32 %v646, 1.442695
    %v672 = vpow.pop %v671
    %v673 = vmul.f32 %v647, 1.442695
    %v674 = vpow.pop %v673
    %v675 = vmul.f32 %v648, 1.442695
    %v676 = vpow.pop %v675
    %v677 = vmul.f32 %v649, 1.442695
    %v678 = vpow.pop %v677
    %v679 = vmul.f32 %v650, 1.442695
    %v680 = vpow.pop %v679
    %v681 = vmul.f32 %v651, 1.442695
    %v682 = vpow.pop %v681
    %v683 = vmul.f32 %v652, 1.442695
    %v684 = vpow.pop %v683
    %v685 = vadd.f32 %v654, 1.0
    %v686 = vadd.f32 %v656, 1.0
    %v687 = vadd.f32 %v658, 1.0
    %v688 = vadd.f32 %v660, 1.0
    %v689 = vadd.f32 %v662, 1.0
    %v690 = vadd.f32 %v664, 1.0
    %v691 = vadd.f32 %v666, 1.0
    %v692 = vadd.f32 %v668, 1.0
    %v693 = vadd.f32 %v670, 1.0
    %v694 = vadd.f32 %v672, 1.0
    %v695 = vadd.f32 %v674, 1.0
    %v696 = vadd.f32 %v676, 1.0
    %v697 = vadd.f32 %v678, 1.0
    %v698 = vadd.f32 %v680, 1.0
    %v699 = vadd.f32 %v682, 1.0
    %v700 = vadd.f32 %v684, 1.0
    %v701 = vrcp.pop %v685
    %v702 = vmul.f32 1.0, %v701
    %v703 = vrcp.pop %v686
    %v704 = vmul.f32 1.0, %v703
    %v705 = vrcp.pop %v687
    %v706 = vmul.f32 1.0, %v705
    %v707 = vrcp.pop %v688
    %v708 = vmul.f32 1.0, %v707
    %v709 = vrcp.pop %v689
    %v710 = vmul.f32 1.0, %v709
    %v711 = vrcp.pop %v690
    %v712 = vmul.f32 1.0, %v711
    %v713 = vrcp.pop %v691
    %v714 = vmul.f32 1.0, %v713
    %v715 = vrcp.pop %v692
    %v716 = vmul.f32 1.0, %v715
    %v717 = vrcp.pop %v693
    %v718 = vmul.f32 1.0, %v717
    %v719 = vrcp.pop %v694
    %v720 = vmul.f32 1.0, %v719
    %v721 = vrcp.pop %v695
    %v722 = vmul.f32 1.0, %v721
    %v723 = vrcp.pop %v696
    %v724 = vmul.f32 1.0, %v723
    %v725 = vrcp.pop %v697
    %v726 = vmul.f32 1.0, %v725
    %v727 = vrcp.pop %v698
    %v728 = vmul.f32 1.0, %v727
    %v729 = vrcp.pop %v699
    %v730 = vmul.f32 1.0, %v729
    %v731 = vrcp.pop %v700
    %v732 = vmul.f32 1.0, %v731
    %v733 = vmul.f32 %v559, %v702
    %v734 = vmul.f32 %v564, %v704
    %v735 = vmul.f32 %v569, %v706
    %v736 = vmul.f32 %v574, %v708
    %v737 = vmul.f32 %v579, %v710
    %v738 = vmul.f32 %v584, %v712
    %v739 = vmul.f32 %v589, %v714
    %v740 = vmul.f32 %v594, %v716
    %v741 = vmul.f32 %v599, %v718
    %v742 = vmul.f32 %v604, %v720
    %v743 = vmul.f32 %v609, %v722
    %v744 = vmul.f32 %v614, %v724
    %v745 = vmul.f32 %v619, %v726
    %v746 = vmul.f32 %v624, %v728
    %v747 = vmul.f32 %v629, %v730
    %v748 = vmul.f32 %v634, %v732
    %v749 = vld [vmem:[%s5] sm:$0x1]
    %v750 = vlaneseq
    %v751 = vshrl.u32 %v750, 7
    %v752 = vsub.s32 0, %v751
    %v753 = vrot.slane %v749, %v752
    %v754 = vmul.f32 %v733, %v753
    %v755 = vmul.f32 %v734, %v753
    %v756 = vmul.f32 %v735, %v753
    %v757 = vmul.f32 %v736, %v753
    %v758 = vmul.f32 %v737, %v753
    %v759 = vmul.f32 %v738, %v753
    %v760 = vmul.f32 %v739, %v753
    %v761 = vmul.f32 %v740, %v753
    %v762 = vmul.f32 %v741, %v753
    %v763 = vmul.f32 %v742, %v753
    %v764 = vmul.f32 %v743, %v753
    %v765 = vmul.f32 %v744, %v753
    %v766 = vmul.f32 %v745, %v753
    %v767 = vmul.f32 %v746, %v753
    %v768 = vmul.f32 %v747, %v753
    %v769 = vmul.f32 %v748, %v753
    %v770 = vsel %vm111, %v754, 0.0
    %771 = vadd.xlane.f32.xlu0 %v770
    %v772 = vpop.xlane.xlu0 %771
    %v773 = vsel %vm111, %v755, 0.0
    %774 = vadd.xlane.f32.xlu0 %v773
    %v775 = vpop.xlane.xlu0 %774
    %v776 = vsel %vm111, %v756, 0.0
    %777 = vadd.xlane.f32.xlu0 %v776
    %v778 = vpop.xlane.xlu0 %777
    %v779 = vsel %vm111, %v757, 0.0
    %780 = vadd.xlane.f32.xlu0 %v779
    %v781 = vpop.xlane.xlu0 %780
    %v782 = vsel %vm111, %v758, 0.0
    %783 = vadd.xlane.f32.xlu0 %v782
    %v784 = vpop.xlane.xlu0 %783
    %v785 = vsel %vm111, %v759, 0.0
    %786 = vadd.xlane.f32.xlu0 %v785
    %v787 = vpop.xlane.xlu0 %786
    %v788 = vsel %vm111, %v760, 0.0
    %789 = vadd.xlane.f32.xlu0 %v788
    %v790 = vpop.xlane.xlu0 %789
    %v791 = vsel %vm111, %v761, 0.0
    %792 = vadd.xlane.f32.xlu0 %v791
    %v793 = vpop.xlane.xlu0 %792
    %v794 = vsel %vm111, %v762, 0.0
    %795 = vadd.xlane.f32.xlu0 %v794
    %v796 = vpop.xlane.xlu0 %795
    %v797 = vsel %vm111, %v763, 0.0
    %798 = vadd.xlane.f32.xlu0 %v797
    %v799 = vpop.xlane.xlu0 %798
    %v800 = vsel %vm111, %v764, 0.0
    %801 = vadd.xlane.f32.xlu0 %v800
    %v802 = vpop.xlane.xlu0 %801
    %v803 = vsel %vm111, %v765, 0.0
    %804 = vadd.xlane.f32.xlu0 %v803
    %v805 = vpop.xlane.xlu0 %804
    %v806 = vsel %vm111, %v766, 0.0
    %807 = vadd.xlane.f32.xlu0 %v806
    %v808 = vpop.xlane.xlu0 %807
    %v809 = vsel %vm111, %v767, 0.0
    %810 = vadd.xlane.f32.xlu0 %v809
    %v811 = vpop.xlane.xlu0 %810
    %v812 = vsel %vm111, %v768, 0.0
    %813 = vadd.xlane.f32.xlu0 %v812
    %v814 = vpop.xlane.xlu0 %813
    %v815 = vsel %vm111, %v769, 0.0
    %816 = vadd.xlane.f32.xlu0 %v815
    %v817 = vpop.xlane.xlu0 %816
    %s818 = sld [smem:[#allocation9]]
    %v819 = vstv %s818
    %v820 = vadd.f32 %v772, %v819
    %v821 = vadd.f32 %v775, %v819
    %v822 = vadd.f32 %v778, %v819
    %v823 = vadd.f32 %v781, %v819
    %v824 = vadd.f32 %v784, %v819
    %v825 = vadd.f32 %v787, %v819
    %v826 = vadd.f32 %v790, %v819
    %v827 = vadd.f32 %v793, %v819
    %v828 = vadd.f32 %v796, %v819
    %v829 = vadd.f32 %v799, %v819
    %v830 = vadd.f32 %v802, %v819
    %v831 = vadd.f32 %v805, %v819
    %v832 = vadd.f32 %v808, %v819
    %v833 = vadd.f32 %v811, %v819
    %v834 = vadd.f32 %v814, %v819
    %v835 = vadd.f32 %v817, %v819
    %v852 = vlaneseq
    %v853 = vand.u32 %v852, 127
    %v854 = vlaneseq
    %v855 = vshrl.u32 %v854, 7
    %v856 = vsub.s32 %v853, %v855
    %v857 = vrot.slane %v820, %v856
    %v858 = vadd.s32 %v853, 4294967288
    %v859 = vlaneseq
    %v860 = vshrl.u32 %v859, 7
    %v861 = vsub.s32 %v858, %v860
    %v862 = vrot.slane %v821, %v861
    %vm863 = vcmask 130112
    %v864 = vsel %vm863, %v862, %v857
    %v865 = vadd.s32 %v853, 4294967280
    %v866 = vlaneseq
    %v867 = vshrl.u32 %v866, 7
    %v868 = vsub.s32 %v865, %v867
    %v869 = vrot.slane %v822, %v868
    %vm870 = vcmask 195712
    %v871 = vsel %vm870, %v869, %v864
    %v872 = vadd.s32 %v853, 4294967272
    %v873 = vlaneseq
    %v874 = vshrl.u32 %v873, 7
    %v875 = vsub.s32 %v872, %v874
    %v876 = vrot.slane %v823, %v875
    %vm877 = vcmask 261312
    %v878 = vsel %vm877, %v876, %v871
    %v879 = vadd.s32 %v853, 4294967264
    %v880 = vlaneseq
    %v881 = vshrl.u32 %v880, 7
    %v882 = vsub.s32 %v879, %v881
    %v883 = vrot.slane %v824, %v882
    %vm884 = vcmask 326912
    %v885 = vsel %vm884, %v883, %v878
    %v886 = vadd.s32 %v853, 4294967256
    %v887 = vlaneseq
    %v888 = vshrl.u32 %v887, 7
    %v889 = vsub.s32 %v886, %v888
    %v890 = vrot.slane %v825, %v889
    %vm891 = vcmask 392512
    %v892 = vsel %vm891, %v890, %v885
    %v893 = vadd.s32 %v853, 4294967248
    %v894 = vlaneseq
    %v895 = vshrl.u32 %v894, 7
    %v896 = vsub.s32 %v893, %v895
    %v897 = vrot.slane %v826, %v896
    %vm898 = vcmask 458112
    %v899 = vsel %vm898, %v897, %v892
    %v900 = vadd.s32 %v853, 4294967240
    %v901 = vlaneseq
    %v902 = vshrl.u32 %v901, 7
    %v903 = vsub.s32 %v900, %v902
    %v904 = vrot.slane %v827, %v903
    %vm905 = vcmask 523712
    %v906 = vsel %vm905, %v904, %v899
    %v907 = vadd.s32 %v853, 4294967232
    %v908 = vlaneseq
    %v909 = vshrl.u32 %v908, 7
    %v910 = vsub.s32 %v907, %v909
    %v911 = vrot.slane %v828, %v910
    %vm912 = vcmask 589312
    %v913 = vsel %vm912, %v911, %v906
    %v914 = vadd.s32 %v853, 4294967224
    %v915 = vlaneseq
    %v916 = vshrl.u32 %v915, 7
    %v917 = vsub.s32 %v914, %v916
    %v918 = vrot.slane %v829, %v917
    %vm919 = vcmask 654912
    %v920 = vsel %vm919, %v918, %v913
    %v921 = vadd.s32 %v853, 4294967216
    %v922 = vlaneseq
    %v923 = vshrl.u32 %v922, 7
    %v924 = vsub.s32 %v921, %v923
    %v925 = vrot.slane %v830, %v924
    %vm926 = vcmask 720512
    %v927 = vsel %vm926, %v925, %v920
    %v928 = vadd.s32 %v853, 4294967208
    %v929 = vlaneseq
    %v930 = vshrl.u32 %v929, 7
    %v931 = vsub.s32 %v928, %v930
    %v932 = vrot.slane %v831, %v931
    %vm933 = vcmask 786112
    %v934 = vsel %vm933, %v932, %v927
    %v935 = vadd.s32 %v853, 4294967200
    %v936 = vlaneseq
    %v937 = vshrl.u32 %v936, 7
    %v938 = vsub.s32 %v935, %v937
    %v939 = vrot.slane %v832, %v938
    %vm940 = vcmask 851712
    %v941 = vsel %vm940, %v939, %v934
    %v942 = vadd.s32 %v853, 4294967192
    %v943 = vlaneseq
    %v944 = vshrl.u32 %v943, 7
    %v945 = vsub.s32 %v942, %v944
    %v946 = vrot.slane %v833, %v945
    %vm947 = vcmask 917312
    %v948 = vsel %vm947, %v946, %v941
    %v949 = vadd.s32 %v853, 4294967184
    %v950 = vlaneseq
    %v951 = vshrl.u32 %v950, 7
    %v952 = vsub.s32 %v949, %v951
    %v953 = vrot.slane %v834, %v952
    %vm954 = vcmask 982912
    %v955 = vsel %vm954, %v953, %v948
    %v956 = vadd.s32 %v853, 4294967176
    %v957 = vlaneseq
    %v958 = vshrl.u32 %v957, 7
    %v959 = vsub.s32 %v956, %v958
    %v960 = vrot.slane %v835, %v959
    %vm961 = vcmask 1048512
    %v962 = vsel %vm961, %v960, %v955
    %964 = vst [vmem:[#allocation10] sm:$0x1] %v962
    %v965 = vxor.u32 %v305, 2147483648
    %v966 = vxor.u32 %v306, 2147483648
    %v967 = vxor.u32 %v307, 2147483648
    %v968 = vxor.u32 %v308, 2147483648
    %v969 = vxor.u32 %v309, 2147483648
    %v970 = vxor.u32 %v310, 2147483648
    %v971 = vxor.u32 %v311, 2147483648
    %v972 = vxor.u32 %v312, 2147483648
    %v973 = vxor.u32 %v313, 2147483648
    %v974 = vxor.u32 %v314, 2147483648
    %v975 = vxor.u32 %v315, 2147483648
    %v976 = vxor.u32 %v316, 2147483648
    %v977 = vxor.u32 %v317, 2147483648
    %v978 = vxor.u32 %v318, 2147483648
    %v979 = vxor.u32 %v319, 2147483648
    %v980 = vxor.u32 %v320, 2147483648
    %v981 = vmul.f32 %v965, 1.442695
    %v982 = vpow.pop %v981
    %v983 = vmul.f32 %v966, 1.442695
    %v984 = vpow.pop %v983
    %v985 = vmul.f32 %v967, 1.442695
    %v986 = vpow.pop %v985
    %v987 = vmul.f32 %v968, 1.442695
    %v988 = vpow.pop %v987
    %v989 = vmul.f32 %v969, 1.442695
    %v990 = vpow.pop %v989
    %v991 = vmul.f32 %v970, 1.442695
    %v992 = vpow.pop %v991
    %v993 = vmul.f32 %v971, 1.442695
    %v994 = vpow.pop %v993
    %v995 = vmul.f32 %v972, 1.442695
    %v996 = vpow.pop %v995
    %v997 = vmul.f32 %v973, 1.442695
    %v998 = vpow.pop %v997
    %v999 = vmul.f32 %v974, 1.442695
    %v1000 = vpow.pop %v999
    %v1001 = vmul.f32 %v975, 1.442695
    %v1002 = vpow.pop %v1001
    %v1003 = vmul.f32 %v976, 1.442695
    %v1004 = vpow.pop %v1003
    %v1005 = vmul.f32 %v977, 1.442695
    %v1006 = vpow.pop %v1005
    %v1007 = vmul.f32 %v978, 1.442695
    %v1008 = vpow.pop %v1007
    %v1009 = vmul.f32 %v979, 1.442695
    %v1010 = vpow.pop %v1009
    %v1011 = vmul.f32 %v980, 1.442695
    %v1012 = vpow.pop %v1011
    %v1013 = vadd.f32 %v982, 1.0
    %v1014 = vadd.f32 %v984, 1.0
    %v1015 = vadd.f32 %v986, 1.0
    %v1016 = vadd.f32 %v988, 1.0
    %v1017 = vadd.f32 %v990, 1.0
    %v1018 = vadd.f32 %v992, 1.0
    %v1019 = vadd.f32 %v994, 1.0
    %v1020 = vadd.f32 %v996, 1.0
    %v1021 = vadd.f32 %v998, 1.0
    %v1022 = vadd.f32 %v1000, 1.0
    %v1023 = vadd.f32 %v1002, 1.0
    %v1024 = vadd.f32 %v1004, 1.0
    %v1025 = vadd.f32 %v1006, 1.0
    %v1026 = vadd.f32 %v1008, 1.0
    %v1027 = vadd.f32 %v1010, 1.0
    %v1028 = vadd.f32 %v1012, 1.0
    %v1029 = vrcp.pop %v1013
    %v1030 = vmul.f32 1.0, %v1029
    %v1031 = vrcp.pop %v1014
    %v1032 = vmul.f32 1.0, %v1031
    %v1033 = vrcp.pop %v1015
    %v1034 = vmul.f32 1.0, %v1033
    %v1035 = vrcp.pop %v1016
    %v1036 = vmul.f32 1.0, %v1035
    %v1037 = vrcp.pop %v1017
    %v1038 = vmul.f32 1.0, %v1037
    %v1039 = vrcp.pop %v1018
    %v1040 = vmul.f32 1.0, %v1039
    %v1041 = vrcp.pop %v1019
    %v1042 = vmul.f32 1.0, %v1041
    %v1043 = vrcp.pop %v1020
    %v1044 = vmul.f32 1.0, %v1043
    %v1045 = vrcp.pop %v1021
    %v1046 = vmul.f32 1.0, %v1045
    %v1047 = vrcp.pop %v1022
    %v1048 = vmul.f32 1.0, %v1047
    %v1049 = vrcp.pop %v1023
    %v1050 = vmul.f32 1.0, %v1049
    %v1051 = vrcp.pop %v1024
    %v1052 = vmul.f32 1.0, %v1051
    %v1053 = vrcp.pop %v1025
    %v1054 = vmul.f32 1.0, %v1053
    %v1055 = vrcp.pop %v1026
    %v1056 = vmul.f32 1.0, %v1055
    %v1057 = vrcp.pop %v1027
    %v1058 = vmul.f32 1.0, %v1057
    %v1059 = vrcp.pop %v1028
    %v1060 = vmul.f32 1.0, %v1059
    %1077 = vset.pattern.permute.xlu0 32
    %1078 = vperm.xlu0 %1077, %v1030
    %v1079 = vpop.permute.xlu0 %1078
    %1080 = vset.pattern.permute.xlu0 32
    %1081 = vperm.xlu0 %1080, %v1032
    %v1082 = vpop.permute.xlu0 %1081
    %1083 = vset.pattern.permute.xlu0 32
    %1084 = vperm.xlu0 %1083, %v1034
    %v1085 = vpop.permute.xlu0 %1084
    %1086 = vset.pattern.permute.xlu0 32
    %1087 = vperm.xlu0 %1086, %v1036
    %v1088 = vpop.permute.xlu0 %1087
    %1089 = vset.pattern.permute.xlu0 32
    %1090 = vperm.xlu0 %1089, %v1038
    %v1091 = vpop.permute.xlu0 %1090
    %1092 = vset.pattern.permute.xlu0 32
    %1093 = vperm.xlu0 %1092, %v1040
    %v1094 = vpop.permute.xlu0 %1093
    %1095 = vset.pattern.permute.xlu0 32
    %1096 = vperm.xlu0 %1095, %v1042
    %v1097 = vpop.permute.xlu0 %1096
    %1098 = vset.pattern.permute.xlu0 32
    %1099 = vperm.xlu0 %1098, %v1044
    %v1100 = vpop.permute.xlu0 %1099
    %1101 = vset.pattern.permute.xlu0 32
    %1102 = vperm.xlu0 %1101, %v1046
    %v1103 = vpop.permute.xlu0 %1102
    %1104 = vset.pattern.permute.xlu0 32
    %1105 = vperm.xlu0 %1104, %v1048
    %v1106 = vpop.permute.xlu0 %1105
    %1107 = vset.pattern.permute.xlu0 32
    %1108 = vperm.xlu0 %1107, %v1050
    %v1109 = vpop.permute.xlu0 %1108
    %1110 = vset.pattern.permute.xlu0 32
    %1111 = vperm.xlu0 %1110, %v1052
    %v1112 = vpop.permute.xlu0 %1111
    %1113 = vset.pattern.permute.xlu0 32
    %1114 = vperm.xlu0 %1113, %v1054
    %v1115 = vpop.permute.xlu0 %1114
    %1116 = vset.pattern.permute.xlu0 32
    %1117 = vperm.xlu0 %1116, %v1056
    %v1118 = vpop.permute.xlu0 %1117
    %1119 = vset.pattern.permute.xlu0 32
    %1120 = vperm.xlu0 %1119, %v1058
    %v1121 = vpop.permute.xlu0 %1120
    %1122 = vset.pattern.permute.xlu0 32
    %1123 = vperm.xlu0 %1122, %v1060
    %v1124 = vpop.permute.xlu0 %1123
    %v1125 = vlaneseq
    %v1126 = vshrl.u32 %v1125, 7
    %v1127 = vsub.s32 %v853, %v1126
    %v1128 = vrot.slane %v1079, %v1127
    %v1129 = vlaneseq
    %v1130 = vshrl.u32 %v1129, 7
    %v1131 = vsub.s32 %v858, %v1130
    %v1132 = vrot.slane %v1082, %v1131
    %v1133 = vsel %vm863, %v1132, %v1128
    %v1134 = vlaneseq
    %v1135 = vshrl.u32 %v1134, 7
    %v1136 = vsub.s32 %v865, %v1135
    %v1137 = vrot.slane %v1085, %v1136
    %v1138 = vsel %vm870, %v1137, %v1133
    %v1139 = vlaneseq
    %v1140 = vshrl.u32 %v1139, 7
    %v1141 = vsub.s32 %v872, %v1140
    %v1142 = vrot.slane %v1088, %v1141
    %v1143 = vsel %vm877, %v1142, %v1138
    %v1144 = vlaneseq
    %v1145 = vshrl.u32 %v1144, 7
    %v1146 = vsub.s32 %v879, %v1145
    %v1147 = vrot.slane %v1091, %v1146
    %v1148 = vsel %vm884, %v1147, %v1143
    %v1149 = vlaneseq
    %v1150 = vshrl.u32 %v1149, 7
    %v1151 = vsub.s32 %v886, %v1150
    %v1152 = vrot.slane %v1094, %v1151
    %v1153 = vsel %vm891, %v1152, %v1148
    %v1154 = vlaneseq
    %v1155 = vshrl.u32 %v1154, 7
    %v1156 = vsub.s32 %v893, %v1155
    %v1157 = vrot.slane %v1097, %v1156
    %v1158 = vsel %vm898, %v1157, %v1153
    %v1159 = vlaneseq
    %v1160 = vshrl.u32 %v1159, 7
    %v1161 = vsub.s32 %v900, %v1160
    %v1162 = vrot.slane %v1100, %v1161
    %v1163 = vsel %vm905, %v1162, %v1158
    %v1164 = vlaneseq
    %v1165 = vshrl.u32 %v1164, 7
    %v1166 = vsub.s32 %v907, %v1165
    %v1167 = vrot.slane %v1103, %v1166
    %v1168 = vsel %vm912, %v1167, %v1163
    %v1169 = vlaneseq
    %v1170 = vshrl.u32 %v1169, 7
    %v1171 = vsub.s32 %v914, %v1170
    %v1172 = vrot.slane %v1106, %v1171
    %v1173 = vsel %vm919, %v1172, %v1168
    %v1174 = vlaneseq
    %v1175 = vshrl.u32 %v1174, 7
    %v1176 = vsub.s32 %v921, %v1175
    %v1177 = vrot.slane %v1109, %v1176
    %v1178 = vsel %vm926, %v1177, %v1173
    %v1179 = vlaneseq
    %v1180 = vshrl.u32 %v1179, 7
    %v1181 = vsub.s32 %v928, %v1180
    %v1182 = vrot.slane %v1112, %v1181
    %v1183 = vsel %vm933, %v1182, %v1178
    %v1184 = vlaneseq
    %v1185 = vshrl.u32 %v1184, 7
    %v1186 = vsub.s32 %v935, %v1185
    %v1187 = vrot.slane %v1115, %v1186
    %v1188 = vsel %vm940, %v1187, %v1183
    %v1189 = vlaneseq
    %v1190 = vshrl.u32 %v1189, 7
    %v1191 = vsub.s32 %v942, %v1190
    %v1192 = vrot.slane %v1118, %v1191
    %v1193 = vsel %vm947, %v1192, %v1188
    %v1194 = vlaneseq
    %v1195 = vshrl.u32 %v1194, 7
    %v1196 = vsub.s32 %v949, %v1195
    %v1197 = vrot.slane %v1121, %v1196
    %v1198 = vsel %vm954, %v1197, %v1193
    %v1199 = vlaneseq
    %v1200 = vshrl.u32 %v1199, 7
    %v1201 = vsub.s32 %v956, %v1200
    %v1202 = vrot.slane %v1124, %v1201
    %v1203 = vsel %vm961, %v1202, %v1198
    %1205 = vst [vmem:[#allocation11] sm:$0x1] %v1203
    // Predicated region
    $region46: #{tpu_custom_call.1} parent=1 // pred_check
      _
    $region47: #{tpu_custom_call.1} parent=1 // pred_check_branch
      %1207 = sbr.rel (0) target = $region49
    $region48: #{tpu_custom_call.1} parent=1 // pred_region
      %s1209 = ssub.s32 16, 16
      %1210 = vsyncadd [#allocation4], %s1209
      %s1212 = sshll.u32 [#allocation10], 4
      %s1213 = int_to_ptr.vmem [resolvable:$true] %s1212
      %1215 = dma.vmem_to_hbm [thread:$0]  %s1213, 16, %s7, [#allocation4]
    $region49: #{tpu_custom_call.1} parent=1 // pred_fallthru
      _
    // Predicated region
    $region50: #{tpu_custom_call.1} parent=1 // pred_check
      _
    $region51: #{tpu_custom_call.1} parent=1 // pred_check_branch
      %1217 = sbr.rel (0) target = $region53
    $region52: #{tpu_custom_call.1} parent=1 // pred_region
      %s1219 = ssub.s32 16, 16
      %1220 = vsyncadd [#allocation12], %s1219
      %s1222 = sshll.u32 [#allocation11], 4
      %s1223 = int_to_ptr.vmem [resolvable:$true] %s1222
      %1225 = dma.vmem_to_hbm [thread:$0]  %s1223, 16, %s8, [#allocation12]
    $region53: #{tpu_custom_call.1} parent=1 // pred_fallthru
      _
    // Predicated region
    $region54: #{tpu_custom_call.1} parent=1 // pred_check
      _
    $region55: #{tpu_custom_call.1} parent=1 // pred_check_branch
      %1227 = sbr.rel (0) target = $region57
    $region56: #{tpu_custom_call.1} parent=1 // pred_region
      %1228 = dma.done [#allocation4], 16
    $region57: #{tpu_custom_call.1} parent=1 // pred_fallthru
      _
    // Predicated region
    $region58: #{tpu_custom_call.1} parent=1 // pred_check
      _
    $region59: #{tpu_custom_call.1} parent=1 // pred_check_branch
      %1230 = sbr.rel (0) target = $region61
    $region60: #{tpu_custom_call.1} parent=1 // pred_region
      %1231 = dma.done [#allocation12], 16
    $region61: #{tpu_custom_call.1} parent=1 // pred_fallthru
      _
    %1232 = vsyncpa [#allocation3], 1
    %1233 = vsyncpa [#allocation7], 1
    %1234 = vsyncpa [#allocation4], 1
    %1235 = vsyncpa [#allocation12], 1
    %1236 = vsyncpa [#allocation5], 1

</llo_original>
